<compile_context>
chip_gen: v7x
topology: tpu7x:2x2x1
jax: 0.10.0
libtpu: 0.0.40
codegen_flags: <defaults>
</compile_context>

<pallas_src>
import functools

import jax
import jax.numpy as jnp
from jax.experimental import pallas as pl
from jax.experimental.pallas import tpu as pltpu

_LANES = 128


def _round_up(x, m):
    return (x + m - 1) // m * m


# ----------------------------- fused kernel ----------------------------------
def _down_kernel(x_ref, w1_ref, s1_ref, b1_ref, w2_ref, s2_ref, b2_ref,
                 o_ref, xp_ref, *, Ho, Wo, Cin, Cpad):
    # ---- MaxPool 2x2: single read of the input block ------------------------
    # x_ref block: (1, Ho, 2, Wo, 2*Cin); trailing dim = [cols 2w | 2w+1].
    xv = x_ref[0]                                       # (Ho, 2, Wo, 2*Cin)
    v = jnp.maximum(xv[:, 0, :, :], xv[:, 1, :, :])     # (Ho, Wo, 2*Cin)
    pooled = jnp.maximum(v[:, :, :Cin], v[:, :, Cin:])  # (Ho, Wo, Cin)

    # ---- zero-padded ('SAME') activation buffer in VMEM ---------------------
    xp_ref[...] = jnp.zeros_like(xp_ref)
    xp_ref[1:Ho + 1, 1:Wo + 1, :Cin] = pooled

    # ---- conv3x3 as one im2col MXU matmul + folded BN + ReLU ----------------
    def conv3x3_bn_relu(w_ref, s_ref, b_ref):
        def tap(dy, dx):
            t = xp_ref[dy:dy + Ho, dx:dx + Wo, :]       # (Ho, Wo, Cpad) f32
            return t.reshape(Ho * Wo, Cpad).astype(jnp.bfloat16)

        patch = jnp.concatenate(
            [tap(dy, dx) for dy in range(3) for dx in range(3)],
            axis=-1)                                    # (Ho*Wo, 9*Cpad) bf16
        y = jnp.dot(patch, w_ref[...], preferred_element_type=jnp.float32)
        # folded conv-bias + BatchNorm, then ReLU (f32 epilogue)
        return jnp.maximum(y * s_ref[...] + b_ref[...], 0.0)   # (Ho*Wo, Cpad)

    y1 = conv3x3_bn_relu(w1_ref, s1_ref, b1_ref)
    xp_ref[1:Ho + 1, 1:Wo + 1, :] = y1.reshape(Ho, Wo, Cpad)   # reuse scratch
    y2 = conv3x3_bn_relu(w2_ref, s2_ref, b2_ref)

    o_ref[0] = y2.reshape(Ho, Wo, Cpad).astype(o_ref.dtype)    # lane-dense store


# ----------------------------- parameter packing -----------------------------
def _fold_bn(conv_bias, gamma, beta, mean, var, eps=1e-5):
    scale = gamma / jnp.sqrt(var + eps)
    bias = (conv_bias - mean) * scale + beta
    return scale, bias


def _pack_weight(w, cin_pad, cout_pad):
    """(3,3,Cin,Cout) -> (9*cin_pad, cout_pad) bf16, zero padded, im2col order."""
    kh, kw, cin, cout = w.shape
    wp = jnp.zeros((kh * kw, cin_pad, cout_pad), jnp.float32)
    wp = wp.at[:, :cin, :cout].set(w.reshape(kh * kw, cin, cout))
    return wp.reshape(kh * kw * cin_pad, cout_pad).astype(jnp.bfloat16)


def _pack_vec(v, cpad):
    out = jnp.zeros((1, cpad), jnp.float32)
    return out.at[0, :v.shape[0]].set(v)


# ----------------------------- Down forward ----------------------------------
def down_forward(x_nchw, params):
    """Equivalent of Down(in_channels, out_channels)(x) with NCHW input."""
    w1, b1, (g1, be1, m1, v1), w2, b2, (g2, be2, m2, v2) = params
    N, Cin, H, W = x_nchw.shape
    Ho, Wo = H // 2, W // 2                    # MaxPool2d(2) floors odd sizes
    Cmid, Cout = w1.shape[-1], w2.shape[-1]
    Cpad = _round_up(max(Cmid, Cout, _LANES), _LANES)

    # NCHW -> NHWC and expose the 2x2 pooling structure as a free reshape.
    x = jnp.transpose(x_nchw[:, :, :2 * Ho, :2 * Wo], (0, 2, 3, 1))
    xr = x.reshape(N, Ho, 2, Wo, 2 * Cin)

    s1, fb1 = _fold_bn(b1, g1, be1, m1, v1)
    s2, fb2 = _fold_bn(b2, g2, be2, m2, v2)
    w1p = _pack_weight(w1, Cpad, Cpad)         # (9*Cpad, Cpad) bf16
    w2p = _pack_weight(w2, Cpad, Cpad)         # (9*Cpad, Cpad) bf16
    s1p, b1p = _pack_vec(s1, Cpad), _pack_vec(fb1, Cpad)
    s2p, b2p = _pack_vec(s2, Cpad), _pack_vec(fb2, Cpad)

    kern = functools.partial(_down_kernel, Ho=Ho, Wo=Wo, Cin=Cin, Cpad=Cpad)
    out = pl.pallas_call(
        kern,
        out_shape=jax.ShapeDtypeStruct((N, Ho, Wo, Cpad), x_nchw.dtype),
        grid=(N,),
        in_specs=[
            pl.BlockSpec((1, Ho, 2, Wo, 2 * Cin), lambda n: (n, 0, 0, 0, 0)),
            pl.BlockSpec((9 * Cpad, Cpad), lambda n: (0, 0)),
            pl.BlockSpec((1, Cpad), lambda n: (0, 0)),
            pl.BlockSpec((1, Cpad), lambda n: (0, 0)),
            pl.BlockSpec((9 * Cpad, Cpad), lambda n: (0, 0)),
            pl.BlockSpec((1, Cpad), lambda n: (0, 0)),
            pl.BlockSpec((1, Cpad), lambda n: (0, 0)),
        ],
        out_specs=pl.BlockSpec((1, Ho, Wo, Cpad), lambda n: (n, 0, 0, 0)),
        scratch_shapes=[pltpu.VMEM((Ho + 2, Wo + 2, Cpad), jnp.float32)],
        compiler_params=pltpu.CompilerParams(
            dimension_semantics=("parallel",)),
    )(xr, w1p, s1p, b1p, w2p, s2p, b2p)

    out = out[..., :Cout]                      # drop channel padding
    return jnp.transpose(out, (0, 3, 1, 2))    # NHWC -> NCHW


# ----------------------------- parameters ------------------------------------
def init_down_params(key, in_channels, out_channels):
    mid = out_channels
    keys = jax.random.split(key, 6)

    def conv_params(k, cin, cout):
        kw, kb = jax.random.split(k)
        w = 0.1 * jax.random.normal(kw, (3, 3, cin, cout), jnp.float32)
        b = 0.05 * jax.random.normal(kb, (cout,), jnp.float32)
        return w, b

    def bn_params(k, c):
        ks = jax.random.split(k, 4)
        gamma = 1.0 + 0.1 * jax.random.normal(ks[0], (c,), jnp.float32)
        beta = 0.1 * jax.random.normal(ks[1], (c,), jnp.float32)
        mean = 0.1 * jax.random.normal(ks[2], (c,), jnp.float32)
        var = 1.0 + 0.1 * jax.random.uniform(ks[3], (c,), jnp.float32)
        return gamma, beta, mean, var

    w1, b1 = conv_params(keys[0], in_channels, mid)
    bn1 = bn_params(keys[1], mid)
    w2, b2 = conv_params(keys[2], mid, out_channels)
    bn2 = bn_params(keys[3], out_channels)
    return (w1, b1, bn1, w2, b2, bn2)


# ----------------------------- pure-JAX reference -----------------------------
def down_reference(x_nchw, params):
    w1, b1, (g1, be1, m1, v1), w2, b2, (g2, be2, m2, v2) = params
    x = jnp.transpose(x_nchw, (0, 2, 3, 1))
    N, H, W, C = x.shape
    x = x.reshape(N, H // 2, 2, W // 2, 2, C).max(axis=(2, 4))

    def block(x, w, b, g, be, m, v):
        y = jax.lax.conv_general_dilated(
            x, w, (1, 1), "SAME",
            dimension_numbers=("NHWC", "HWIO", "NHWC")) + b
        y = (y - m) / jnp.sqrt(v + 1e-5) * g + be
        return jnp.maximum(y, 0.0)

    x = block(x, w1, b1, g1, be1, m1, v1)
    x = block(x, w2, b2, g2, be2, m2, v2)
    return jnp.transpose(x, (0, 3, 1, 2))


if __name__ == "__main__":
    key = jax.random.PRNGKey(0)
    k_x, k_p = jax.random.split(key)

    N, Cin, Hs, Ws = 2, 4, 16, 16
    Cout = 8
    x = jax.random.normal(k_x, (N, Cin, Hs, Ws), jnp.float32)   # NCHW, like torch
    params = init_down_params(k_p, Cin, Cout)

    out = jax.jit(down_forward)(x, params)
    out = jax.block_until_ready(out)
    assert out.shape == (N, Cout, Hs // 2, Ws // 2), out.shape

    ref = down_reference(x, params)
    # bf16 matmul inputs (f32 accumulation) -> loosened tolerance vs f32 ref
    assert jnp.allclose(out, ref, atol=5e-2, rtol=5e-2), float(
        jnp.max(jnp.abs(out - ref)))

    print("KERNEL_OK")
</pallas_src>

<mosaic_0001>
module attributes {stable_mosaic.version = 11 : i64} {
  func.func @_down_kernel(%arg0: i32, %arg1: memref<1x8x2x8x8xf32, #tpu.memory_space<vmem>>, %arg2: memref<1152x128xbf16, #tpu.memory_space<vmem>>, %arg3: memref<1x128xf32, #tpu.memory_space<vmem>>, %arg4: memref<1x128xf32, #tpu.memory_space<vmem>>, %arg5: memref<1152x128xbf16, #tpu.memory_space<vmem>>, %arg6: memref<1x128xf32, #tpu.memory_space<vmem>>, %arg7: memref<1x128xf32, #tpu.memory_space<vmem>>, %arg8: memref<1x8x8x128xf32, #tpu.memory_space<vmem>>, %arg9: memref<10x10x128xf32, #tpu.memory_space<vmem>>) attributes {dimension_semantics = [#tpu.dimension_semantics<parallel>], iteration_bounds = array<i64: 2>, scalar_prefetch = 0 : i64, scratch_operands = 1 : i64, tpu.core_type = #tpu.core_type<tc>, window_params = [{transform_indices = @transform_0, window_bounds = array<i64: 1, 8, 2, 8, 8>}, {pipeline_mode = #tpu.pipeline_mode<synchronous>, transform_indices = @transform_1, window_bounds = array<i64: 1152, 128>}, {pipeline_mode = #tpu.pipeline_mode<synchronous>, transform_indices = @transform_2, window_bounds = array<i64: 1, 128>}, {pipeline_mode = #tpu.pipeline_mode<synchronous>, transform_indices = @transform_3, window_bounds = array<i64: 1, 128>}, {pipeline_mode = #tpu.pipeline_mode<synchronous>, transform_indices = @transform_4, window_bounds = array<i64: 1152, 128>}, {pipeline_mode = #tpu.pipeline_mode<synchronous>, transform_indices = @transform_5, window_bounds = array<i64: 1, 128>}, {pipeline_mode = #tpu.pipeline_mode<synchronous>, transform_indices = @transform_6, window_bounds = array<i64: 1, 128>}, {transform_indices = @transform_7, window_bounds = array<i64: 1, 8, 8, 128>}]} {
    %c0 = arith.constant 0 : index
    %c0_0 = arith.constant 0 : index
    %c0_1 = arith.constant 0 : index
    %c0_2 = arith.constant 0 : index
    %c0_3 = arith.constant 0 : index
    %0 = vector.load %arg1[%c0, %c0_0, %c0_1, %c0_2, %c0_3] : memref<1x8x2x8x8xf32, #tpu.memory_space<vmem>>, vector<1x8x2x8x8xf32>
    %1 = vector.shape_cast %0 : vector<1x8x2x8x8xf32> to vector<8x2x8x8xf32>
    %2 = vector.extract_strided_slice %1 {offsets = [0, 0, 0, 0], sizes = [8, 1, 8, 8], strides = [1, 1, 1, 1]} : vector<8x2x8x8xf32> to vector<8x1x8x8xf32>
    %3 = vector.shape_cast %2 : vector<8x1x8x8xf32> to vector<8x8x8xf32>
    %4 = vector.extract_strided_slice %1 {offsets = [0, 1, 0, 0], sizes = [8, 1, 8, 8], strides = [1, 1, 1, 1]} : vector<8x2x8x8xf32> to vector<8x1x8x8xf32>
    %5 = vector.shape_cast %4 : vector<8x1x8x8xf32> to vector<8x8x8xf32>
    %6 = arith.maximumf %3, %5 : vector<8x8x8xf32>
    %7 = vector.extract_strided_slice %6 {offsets = [0, 0, 0], sizes = [8, 8, 4], strides = [1, 1, 1]} : vector<8x8x8xf32> to vector<8x8x4xf32>
    %8 = vector.extract_strided_slice %6 {offsets = [0, 0, 4], sizes = [8, 8, 4], strides = [1, 1, 1]} : vector<8x8x8xf32> to vector<8x8x4xf32>
    %9 = arith.maximumf %7, %8 : vector<8x8x4xf32>
    %cst = arith.constant 0.000000e+00 : f32
    %10 = vector.broadcast %cst : f32 to vector<10x10x128xf32>
    %c0_4 = arith.constant 0 : index
    %c0_5 = arith.constant 0 : index
    %c0_6 = arith.constant 0 : index
    %11 = vector.load %arg9[%c0_4, %c0_5, %c0_6] : memref<10x10x128xf32, #tpu.memory_space<vmem>>, vector<10x10x128xf32>
    tpu.vector_store %arg9[%c0_4, %c0_5, %c0_6], %10 {strides = array<i32>} : memref<10x10x128xf32, #tpu.memory_space<vmem>>, vector<10x10x128xf32>,
    %c1 = arith.constant 1 : index
    %c1_7 = arith.constant 1 : index
    %c0_8 = arith.constant 0 : index
    %12 = vector.load %arg9[%c1, %c1_7, %c0_8] : memref<10x10x128xf32, #tpu.memory_space<vmem>>, vector<8x8x4xf32>
    tpu.vector_store %arg9[%c1, %c1_7, %c0_8], %9 {strides = array<i32>} : memref<10x10x128xf32, #tpu.memory_space<vmem>>, vector<8x8x4xf32>,
    %c0_9 = arith.constant 0 : index
    %c0_10 = arith.constant 0 : index
    %c0_11 = arith.constant 0 : index
    %13 = vector.load %arg9[%c0_9, %c0_10, %c0_11] : memref<10x10x128xf32, #tpu.memory_space<vmem>>, vector<8x8x128xf32>
    %14 = vector.shape_cast %13 : vector<8x8x128xf32> to vector<64x128xf32>
    %15 = arith.truncf %14 : vector<64x128xf32> to vector<64x128xbf16>
    %c0_12 = arith.constant 0 : index
    %c1_13 = arith.constant 1 : index
    %c0_14 = arith.constant 0 : index
    %16 = vector.load %arg9[%c0_12, %c1_13, %c0_14] : memref<10x10x128xf32, #tpu.memory_space<vmem>>, vector<8x8x128xf32>
    %17 = vector.shape_cast %16 : vector<8x8x128xf32> to vector<64x128xf32>
    %18 = arith.truncf %17 : vector<64x128xf32> to vector<64x128xbf16>
    %c0_15 = arith.constant 0 : index
    %c2 = arith.constant 2 : index
    %c0_16 = arith.constant 0 : index
    %19 = vector.load %arg9[%c0_15, %c2, %c0_16] : memref<10x10x128xf32, #tpu.memory_space<vmem>>, vector<8x8x128xf32>
    %20 = vector.shape_cast %19 : vector<8x8x128xf32> to vector<64x128xf32>
    %21 = arith.truncf %20 : vector<64x128xf32> to vector<64x128xbf16>
    %c1_17 = arith.constant 1 : index
    %c0_18 = arith.constant 0 : index
    %c0_19 = arith.constant 0 : index
    %22 = vector.load %arg9[%c1_17, %c0_18, %c0_19] : memref<10x10x128xf32, #tpu.memory_space<vmem>>, vector<8x8x128xf32>
    %23 = vector.shape_cast %22 : vector<8x8x128xf32> to vector<64x128xf32>
    %24 = arith.truncf %23 : vector<64x128xf32> to vector<64x128xbf16>
    %c1_20 = arith.constant 1 : index
    %c1_21 = arith.constant 1 : index
    %c0_22 = arith.constant 0 : index
    %25 = vector.load %arg9[%c1_20, %c1_21, %c0_22] : memref<10x10x128xf32, #tpu.memory_space<vmem>>, vector<8x8x128xf32>
    %26 = vector.shape_cast %25 : vector<8x8x128xf32> to vector<64x128xf32>
    %27 = arith.truncf %26 : vector<64x128xf32> to vector<64x128xbf16>
    %c1_23 = arith.constant 1 : index
    %c2_24 = arith.constant 2 : index
    %c0_25 = arith.constant 0 : index
    %28 = vector.load %arg9[%c1_23, %c2_24, %c0_25] : memref<10x10x128xf32, #tpu.memory_space<vmem>>, vector<8x8x128xf32>
    %29 = vector.shape_cast %28 : vector<8x8x128xf32> to vector<64x128xf32>
    %30 = arith.truncf %29 : vector<64x128xf32> to vector<64x128xbf16>
    %c2_26 = arith.constant 2 : index
    %c0_27 = arith.constant 0 : index
    %c0_28 = arith.constant 0 : index
    %31 = vector.load %arg9[%c2_26, %c0_27, %c0_28] : memref<10x10x128xf32, #tpu.memory_space<vmem>>, vector<8x8x128xf32>
    %32 = vector.shape_cast %31 : vector<8x8x128xf32> to vector<64x128xf32>
    %33 = arith.truncf %32 : vector<64x128xf32> to vector<64x128xbf16>
    %c2_29 = arith.constant 2 : index
    %c1_30 = arith.constant 1 : index
    %c0_31 = arith.constant 0 : index
    %34 = vector.load %arg9[%c2_29, %c1_30, %c0_31] : memref<10x10x128xf32, #tpu.memory_space<vmem>>, vector<8x8x128xf32>
    %35 = vector.shape_cast %34 : vector<8x8x128xf32> to vector<64x128xf32>
    %36 = arith.truncf %35 : vector<64x128xf32> to vector<64x128xbf16>
    %c2_32 = arith.constant 2 : index
    %c2_33 = arith.constant 2 : index
    %c0_34 = arith.constant 0 : index
    %37 = vector.load %arg9[%c2_32, %c2_33, %c0_34] : memref<10x10x128xf32, #tpu.memory_space<vmem>>, vector<8x8x128xf32>
    %38 = vector.shape_cast %37 : vector<8x8x128xf32> to vector<64x128xf32>
    %39 = arith.truncf %38 : vector<64x128xf32> to vector<64x128xbf16>
    %40 = tpu.concatenate %15, %18, %21, %24, %27, %30, %33, %36, %39 in 1 : vector<64x128xbf16>, vector<64x128xbf16>, vector<64x128xbf16>, vector<64x128xbf16>, vector<64x128xbf16>, vector<64x128xbf16>, vector<64x128xbf16>, vector<64x128xbf16>, vector<64x128xbf16> -> vector<64x1152xbf16>
    %c0_35 = arith.constant 0 : index
    %c0_36 = arith.constant 0 : index
    %41 = vector.load %arg2[%c0_35, %c0_36] : memref<1152x128xbf16, #tpu.memory_space<vmem>>, vector<1152x128xbf16>
    %cst_37 = arith.constant dense<0.000000e+00> : vector<64x128xf32>
    %42 = tpu.matmul %40, %41, %cst_37 {dimension_numbers = #tpu.dot_dimension_numbers<[1], [0], [0], [1], [0, 0, 1, 1], [], []>} : vector<64x1152xbf16>, vector<1152x128xbf16>, vector<64x128xf32> -> vector<64x128xf32>
    %c0_38 = arith.constant 0 : index
    %c0_39 = arith.constant 0 : index
    %43 = vector.load %arg3[%c0_38, %c0_39] : memref<1x128xf32, #tpu.memory_space<vmem>>, vector<1x128xf32>
    %44 = vector.broadcast %43 : vector<1x128xf32> to vector<64x128xf32>
    %45 = arith.mulf %42, %44 : vector<64x128xf32>
    %c0_40 = arith.constant 0 : index
    %c0_41 = arith.constant 0 : index
    %46 = vector.load %arg4[%c0_40, %c0_41] : memref<1x128xf32, #tpu.memory_space<vmem>>, vector<1x128xf32>
    %47 = vector.broadcast %46 : vector<1x128xf32> to vector<64x128xf32>
    %48 = arith.addf %45, %47 : vector<64x128xf32>
    %cst_42 = arith.constant 0.000000e+00 : f32
    %49 = vector.broadcast %cst_42 : f32 to vector<64x128xf32>
    %50 = arith.maximumf %48, %49 : vector<64x128xf32>
    %51 = vector.shape_cast %50 : vector<64x128xf32> to vector<8x8x128xf32>
    %c1_43 = arith.constant 1 : index
    %c1_44 = arith.constant 1 : index
    %c0_45 = arith.constant 0 : index
    %52 = vector.load %arg9[%c1_43, %c1_44, %c0_45] : memref<10x10x128xf32, #tpu.memory_space<vmem>>, vector<8x8x128xf32>
    tpu.vector_store %arg9[%c1_43, %c1_44, %c0_45], %51 {strides = array<i32>} : memref<10x10x128xf32, #tpu.memory_space<vmem>>, vector<8x8x128xf32>,
    %c0_46 = arith.constant 0 : index
    %c0_47 = arith.constant 0 : index
    %c0_48 = arith.constant 0 : index
    %53 = vector.load %arg9[%c0_46, %c0_47, %c0_48] : memref<10x10x128xf32, #tpu.memory_space<vmem>>, vector<8x8x128xf32>
    %54 = vector.shape_cast %53 : vector<8x8x128xf32> to vector<64x128xf32>
    %55 = arith.truncf %54 : vector<64x128xf32> to vector<64x128xbf16>
    %c0_49 = arith.constant 0 : index
    %c1_50 = arith.constant 1 : index
    %c0_51 = arith.constant 0 : index
    %56 = vector.load %arg9[%c0_49, %c1_50, %c0_51] : memref<10x10x128xf32, #tpu.memory_space<vmem>>, vector<8x8x128xf32>
    %57 = vector.shape_cast %56 : vector<8x8x128xf32> to vector<64x128xf32>
    %58 = arith.truncf %57 : vector<64x128xf32> to vector<64x128xbf16>
    %c0_52 = arith.constant 0 : index
    %c2_53 = arith.constant 2 : index
    %c0_54 = arith.constant 0 : index
    %59 = vector.load %arg9[%c0_52, %c2_53, %c0_54] : memref<10x10x128xf32, #tpu.memory_space<vmem>>, vector<8x8x128xf32>
    %60 = vector.shape_cast %59 : vector<8x8x128xf32> to vector<64x128xf32>
    %61 = arith.truncf %60 : vector<64x128xf32> to vector<64x128xbf16>
    %c1_55 = arith.constant 1 : index
    %c0_56 = arith.constant 0 : index
    %c0_57 = arith.constant 0 : index
    %62 = vector.load %arg9[%c1_55, %c0_56, %c0_57] : memref<10x10x128xf32, #tpu.memory_space<vmem>>, vector<8x8x128xf32>
    %63 = vector.shape_cast %62 : vector<8x8x128xf32> to vector<64x128xf32>
    %64 = arith.truncf %63 : vector<64x128xf32> to vector<64x128xbf16>
    %c1_58 = arith.constant 1 : index
    %c1_59 = arith.constant 1 : index
    %c0_60 = arith.constant 0 : index
    %65 = vector.load %arg9[%c1_58, %c1_59, %c0_60] : memref<10x10x128xf32, #tpu.memory_space<vmem>>, vector<8x8x128xf32>
    %66 = vector.shape_cast %65 : vector<8x8x128xf32> to vector<64x128xf32>
    %67 = arith.truncf %66 : vector<64x128xf32> to vector<64x128xbf16>
    %c1_61 = arith.constant 1 : index
    %c2_62 = arith.constant 2 : index
    %c0_63 = arith.constant 0 : index
    %68 = vector.load %arg9[%c1_61, %c2_62, %c0_63] : memref<10x10x128xf32, #tpu.memory_space<vmem>>, vector<8x8x128xf32>
    %69 = vector.shape_cast %68 : vector<8x8x128xf32> to vector<64x128xf32>
    %70 = arith.truncf %69 : vector<64x128xf32> to vector<64x128xbf16>
    %c2_64 = arith.constant 2 : index
    %c0_65 = arith.constant 0 : index
    %c0_66 = arith.constant 0 : index
    %71 = vector.load %arg9[%c2_64, %c0_65, %c0_66] : memref<10x10x128xf32, #tpu.memory_space<vmem>>, vector<8x8x128xf32>
    %72 = vector.shape_cast %71 : vector<8x8x128xf32> to vector<64x128xf32>
    %73 = arith.truncf %72 : vector<64x128xf32> to vector<64x128xbf16>
    %c2_67 = arith.constant 2 : index
    %c1_68 = arith.constant 1 : index
    %c0_69 = arith.constant 0 : index
    %74 = vector.load %arg9[%c2_67, %c1_68, %c0_69] : memref<10x10x128xf32, #tpu.memory_space<vmem>>, vector<8x8x128xf32>
    %75 = vector.shape_cast %74 : vector<8x8x128xf32> to vector<64x128xf32>
    %76 = arith.truncf %75 : vector<64x128xf32> to vector<64x128xbf16>
    %c2_70 = arith.constant 2 : index
    %c2_71 = arith.constant 2 : index
    %c0_72 = arith.constant 0 : index
    %77 = vector.load %arg9[%c2_70, %c2_71, %c0_72] : memref<10x10x128xf32, #tpu.memory_space<vmem>>, vector<8x8x128xf32>
    %78 = vector.shape_cast %77 : vector<8x8x128xf32> to vector<64x128xf32>
    %79 = arith.truncf %78 : vector<64x128xf32> to vector<64x128xbf16>
    %80 = tpu.concatenate %55, %58, %61, %64, %67, %70, %73, %76, %79 in 1 : vector<64x128xbf16>, vector<64x128xbf16>, vector<64x128xbf16>, vector<64x128xbf16>, vector<64x128xbf16>, vector<64x128xbf16>, vector<64x128xbf16>, vector<64x128xbf16>, vector<64x128xbf16> -> vector<64x1152xbf16>
    %c0_73 = arith.constant 0 : index
    %c0_74 = arith.constant 0 : index
    %81 = vector.load %arg5[%c0_73, %c0_74] : memref<1152x128xbf16, #tpu.memory_space<vmem>>, vector<1152x128xbf16>
    %cst_75 = arith.constant dense<0.000000e+00> : vector<64x128xf32>
    %82 = tpu.matmul %80, %81, %cst_75 {dimension_numbers = #tpu.dot_dimension_numbers<[1], [0], [0], [1], [0, 0, 1, 1], [], []>} : vector<64x1152xbf16>, vector<1152x128xbf16>, vector<64x128xf32> -> vector<64x128xf32>
    %c0_76 = arith.constant 0 : index
    %c0_77 = arith.constant 0 : index
    %83 = vector.load %arg6[%c0_76, %c0_77] : memref<1x128xf32, #tpu.memory_space<vmem>>, vector<1x128xf32>
    %84 = vector.broadcast %83 : vector<1x128xf32> to vector<64x128xf32>
    %85 = arith.mulf %82, %84 : vector<64x128xf32>
    %c0_78 = arith.constant 0 : index
    %c0_79 = arith.constant 0 : index
    %86 = vector.load %arg7[%c0_78, %c0_79] : memref<1x128xf32, #tpu.memory_space<vmem>>, vector<1x128xf32>
    %87 = vector.broadcast %86 : vector<1x128xf32> to vector<64x128xf32>
    %88 = arith.addf %85, %87 : vector<64x128xf32>
    %cst_80 = arith.constant 0.000000e+00 : f32
    %89 = vector.broadcast %cst_80 : f32 to vector<64x128xf32>
    %90 = arith.maximumf %88, %89 : vector<64x128xf32>
    %91 = vector.shape_cast %90 : vector<64x128xf32> to vector<8x8x128xf32>
    %c0_81 = arith.constant 0 : index
    %c0_82 = arith.constant 0 : index
    %c0_83 = arith.constant 0 : index
    %c0_84 = arith.constant 0 : index
    %92 = vector.load %arg8[%c0_81, %c0_82, %c0_83, %c0_84] : memref<1x8x8x128xf32, #tpu.memory_space<vmem>>, vector<1x8x8x128xf32>
    %93 = vector.shape_cast %92 : vector<1x8x8x128xf32> to vector<8x8x128xf32>
    %94 = vector.shape_cast %91 : vector<8x8x128xf32> to vector<1x8x8x128xf32>
    tpu.vector_store %arg8[%c0_81, %c0_82, %c0_83, %c0_84], %94 {strides = array<i32>} : memref<1x8x8x128xf32, #tpu.memory_space<vmem>>, vector<1x8x8x128xf32>,
    return
  }
  func.func @transform_0(%arg0: i32) -> (i32, i32, i32, i32, i32) {
    %c0_i32 = arith.constant 0 : i32
    %c0_i32_0 = arith.constant 0 : i32
    %c0_i32_1 = arith.constant 0 : i32
    %c0_i32_2 = arith.constant 0 : i32
    %c0_i32_3 = arith.constant 0 : i32
    return %arg0, %c0_i32, %c0_i32_0, %c0_i32_1, %c0_i32_2 : i32, i32, i32, i32, i32
  }
  func.func @transform_1(%arg0: i32) -> (i32, i32) {
    %c0_i32 = arith.constant 0 : i32
    %c0_i32_0 = arith.constant 0 : i32
    %c0_i32_1 = arith.constant 0 : i32
    return %c0_i32, %c0_i32_0 : i32, i32
  }
  func.func @transform_2(%arg0: i32) -> (i32, i32) {
    %c0_i32 = arith.constant 0 : i32
    %c0_i32_0 = arith.constant 0 : i32
    %c0_i32_1 = arith.constant 0 : i32
    return %c0_i32, %c0_i32_0 : i32, i32
  }
  func.func @transform_3(%arg0: i32) -> (i32, i32) {
    %c0_i32 = arith.constant 0 : i32
    %c0_i32_0 = arith.constant 0 : i32
    %c0_i32_1 = arith.constant 0 : i32
    return %c0_i32, %c0_i32_0 : i32, i32
  }
  func.func @transform_4(%arg0: i32) -> (i32, i32) {
    %c0_i32 = arith.constant 0 : i32
    %c0_i32_0 = arith.constant 0 : i32
    %c0_i32_1 = arith.constant 0 : i32
    return %c0_i32, %c0_i32_0 : i32, i32
  }
  func.func @transform_5(%arg0: i32) -> (i32, i32) {
    %c0_i32 = arith.constant 0 : i32
    %c0_i32_0 = arith.constant 0 : i32
    %c0_i32_1 = arith.constant 0 : i32
    return %c0_i32, %c0_i32_0 : i32, i32
  }
  func.func @transform_6(%arg0: i32) -> (i32, i32) {
    %c0_i32 = arith.constant 0 : i32
    %c0_i32_0 = arith.constant 0 : i32
    %c0_i32_1 = arith.constant 0 : i32
    return %c0_i32, %c0_i32_0 : i32, i32
  }
  func.func @transform_7(%arg0: i32) -> (i32, i32, i32, i32) {
    %c0_i32 = arith.constant 0 : i32
    %c0_i32_0 = arith.constant 0 : i32
    %c0_i32_1 = arith.constant 0 : i32
    %c0_i32_2 = arith.constant 0 : i32
    return %arg0, %c0_i32, %c0_i32_0, %c0_i32_1 : i32, i32, i32, i32
  }
}

</mosaic_0001>

<llo_original>
// kernel: down_forward.1
$region0: #{down_forward.1}
  #allocation0 [shape = 'u32[]', space=smem, size = 0x4, offset = 0x4, fixed_abs, tag = 'smem constant byte address 0x4 - core index']
  #allocation1 [shape = 'u32[144,128]{1,0:T(1,128)}', space=vmem, size = 0x12000, scoped, tag = 'internal scratch']
  #allocation2 [shape = 'f32[10,10,128]{2,1,0:T(8,128)}', space=vmem, size = 0x14000, scoped, tag = 'scratch operand']
  %s0 = inlined_call_operand.vmem [shape: f32[2,8,2,8,8], index: 0, kind: input, shape index: {}]
  %s1 = inlined_call_operand.vmem [shape: bf16[1152,128], index: 1, kind: input, shape index: {}]
  %s2 = inlined_call_operand.vmem [shape: f32[1,128], index: 2, kind: input, shape index: {}]
  %s3 = inlined_call_operand.vmem [shape: f32[1,128], index: 3, kind: input, shape index: {}]
  %s4 = inlined_call_operand.vmem [shape: bf16[1152,128], index: 4, kind: input, shape index: {}]
  %s5 = inlined_call_operand.vmem [shape: f32[1,128], index: 5, kind: input, shape index: {}]
  %s6 = inlined_call_operand.vmem [shape: f32[1,128], index: 6, kind: input, shape index: {}]
  %s7 = inlined_call_operand.vmem [shape: f32[2,8,8,128], index: 7, kind: output, shape index: {}]
  %s8 = sld [smem:[#allocation0]]
  $region61: #{down_forward.1} parent=0
    _
  %s10 = ssub.s32 1, %s8
  %s11 = scalar_select 0, %s10, %s8
  loop: start=0, step=1, limit=4
  $region2: #{down_forward.1} parent=0 // loop_pre_header
    _
  $region3: #{down_forward.1} parent=0 // loop_header
    %s13 = sphi 0, %s17
    %p14 = scmp.ge.s32.totalorder %s13, 4
    %s23 = sphi 0, %s25
    %s26 = sphi 0, %s23
    %s27 = sphi 0, %s26
    %s43 = sphi 0, %s27
    %s47 = sphi 0, %s47
    %s49 = sphi 0, %s47
    %s50 = sphi 0, %s49
    %s64 = sphi 0, %s50
    %s68 = sphi 0, %s68
    %s70 = sphi 0, %s68
    %s71 = sphi 0, %s70
    %s85 = sphi 0, %s71
    %s89 = sphi 0, %s89
    %s91 = sphi 0, %s89
    %s92 = sphi 0, %s91
    %s106 = sphi 0, %s92
    %s110 = sphi 0, %s110
    %s112 = sphi 0, %s110
    %s113 = sphi 0, %s112
    %s127 = sphi 0, %s113
    %s131 = sphi 0, %s131
    %s133 = sphi 0, %s131
    %s134 = sphi 0, %s133
    %s148 = sphi 0, %s134
    %s152 = sphi 0, %s152
    %s154 = sphi 0, %s152
    %s155 = sphi 0, %s154
    %s169 = sphi 0, %s155
    %s175 = sphi 0, %s177
    %s178 = sphi 0, %s175
    %s179 = sphi 0, %s178
    %s195 = sphi 0, %s179
  $region4: #{down_forward.1} parent=0 // loop_header_branch
    %16 = sbr.rel (%p14) target = $region8
  $region5: #{down_forward.1} parent=0 // loop_body
    %s18 = ssub.s32 %s13, 1
    %s19 = ssub.s32 %s13, 2
    %s20 = sadd.s32 %s13, 1
    %s21 = ssub.s32 %s13, %s20
    %p22 = scmp.eq.s32.totalorder %s21, 0
    %s24 = sadd.s32 %s23, 1
    %s25 = scalar_select %p22, %s23, %s24
    %p28 = pneg %p22
    %p29 = scmp.eq.s32.totalorder %s13, 1
    %p30 = por %p28, %p29
    %p31 = scmp.ne.s32.totalorder %s23, %s26
    %p32 = scmp.eq.s32.totalorder %s13, 0
    %p33 = por %p31, %p32
    %p34 = scmp.ne.s32.totalorder %s23, %s26
    %p35 = scmp.eq.s32.totalorder %s18, 1
    %p36 = por %p34, %p35
    %p37 = scmp.ne.s32.totalorder %s26, %s27
    %p38 = scmp.eq.s32.totalorder %s18, 0
    %p39 = por %p37, %p38
    %p40 = scmp.ne.s32.totalorder %s26, %s27
    %p41 = scmp.eq.s32.totalorder %s19, 1
    %p42 = por %p40, %p41
    %p44 = scmp.ne.s32.totalorder %s27, %s43
    %p45 = scmp.eq.s32.totalorder %s19, 0
    %p46 = por %p44, %p45
    %s48 = sadd.s32 %s47, 1
    %p51 = scmp.eq.s32.totalorder %s13, 1
    %p52 = scmp.ne.s32.totalorder %s47, %s49
    %p53 = scmp.eq.s32.totalorder %s13, 0
    %p54 = por %p52, %p53
    %p55 = scmp.ne.s32.totalorder %s47, %s49
    %p56 = scmp.eq.s32.totalorder %s18, 1
    %p57 = por %p55, %p56
    %p58 = scmp.ne.s32.totalorder %s49, %s50
    %p59 = scmp.eq.s32.totalorder %s18, 0
    %p60 = por %p58, %p59
    %p61 = scmp.ne.s32.totalorder %s49, %s50
    %p62 = scmp.eq.s32.totalorder %s19, 1
    %p63 = por %p61, %p62
    %p65 = scmp.ne.s32.totalorder %s50, %s64
    %p66 = scmp.eq.s32.totalorder %s19, 0
    %p67 = por %p65, %p66
    %s69 = sadd.s32 %s68, 1
    %p72 = scmp.eq.s32.totalorder %s13, 1
    %p73 = scmp.ne.s32.totalorder %s68, %s70
    %p74 = scmp.eq.s32.totalorder %s13, 0
    %p75 = por %p73, %p74
    %p76 = scmp.ne.s32.totalorder %s68, %s70
    %p77 = scmp.eq.s32.totalorder %s18, 1
    %p78 = por %p76, %p77
    %p79 = scmp.ne.s32.totalorder %s70, %s71
    %p80 = scmp.eq.s32.totalorder %s18, 0
    %p81 = por %p79, %p80
    %p82 = scmp.ne.s32.totalorder %s70, %s71
    %p83 = scmp.eq.s32.totalorder %s19, 1
    %p84 = por %p82, %p83
    %p86 = scmp.ne.s32.totalorder %s71, %s85
    %p87 = scmp.eq.s32.totalorder %s19, 0
    %p88 = por %p86, %p87
    %s90 = sadd.s32 %s89, 1
    %p93 = scmp.eq.s32.totalorder %s13, 1
    %p94 = scmp.ne.s32.totalorder %s89, %s91
    %p95 = scmp.eq.s32.totalorder %s13, 0
    %p96 = por %p94, %p95
    %p97 = scmp.ne.s32.totalorder %s89, %s91
    %p98 = scmp.eq.s32.totalorder %s18, 1
    %p99 = por %p97, %p98
    %p100 = scmp.ne.s32.totalorder %s91, %s92
    %p101 = scmp.eq.s32.totalorder %s18, 0
    %p102 = por %p100, %p101
    %p103 = scmp.ne.s32.totalorder %s91, %s92
    %p104 = scmp.eq.s32.totalorder %s19, 1
    %p105 = por %p103, %p104
    %p107 = scmp.ne.s32.totalorder %s92, %s106
    %p108 = scmp.eq.s32.totalorder %s19, 0
    %p109 = por %p107, %p108
    %s111 = sadd.s32 %s110, 1
    %p114 = scmp.eq.s32.totalorder %s13, 1
    %p115 = scmp.ne.s32.totalorder %s110, %s112
    %p116 = scmp.eq.s32.totalorder %s13, 0
    %p117 = por %p115, %p116
    %p118 = scmp.ne.s32.totalorder %s110, %s112
    %p119 = scmp.eq.s32.totalorder %s18, 1
    %p120 = por %p118, %p119
    %p121 = scmp.ne.s32.totalorder %s112, %s113
    %p122 = scmp.eq.s32.totalorder %s18, 0
    %p123 = por %p121, %p122
    %p124 = scmp.ne.s32.totalorder %s112, %s113
    %p125 = scmp.eq.s32.totalorder %s19, 1
    %p126 = por %p124, %p125
    %p128 = scmp.ne.s32.totalorder %s113, %s127
    %p129 = scmp.eq.s32.totalorder %s19, 0
    %p130 = por %p128, %p129
    %s132 = sadd.s32 %s131, 1
    %p135 = scmp.eq.s32.totalorder %s13, 1
    %p136 = scmp.ne.s32.totalorder %s131, %s133
    %p137 = scmp.eq.s32.totalorder %s13, 0
    %p138 = por %p136, %p137
    %p139 = scmp.ne.s32.totalorder %s131, %s133
    %p140 = scmp.eq.s32.totalorder %s18, 1
    %p141 = por %p139, %p140
    %p142 = scmp.ne.s32.totalorder %s133, %s134
    %p143 = scmp.eq.s32.totalorder %s18, 0
    %p144 = por %p142, %p143
    %p145 = scmp.ne.s32.totalorder %s133, %s134
    %p146 = scmp.eq.s32.totalorder %s19, 1
    %p147 = por %p145, %p146
    %p149 = scmp.ne.s32.totalorder %s134, %s148
    %p150 = scmp.eq.s32.totalorder %s19, 0
    %p151 = por %p149, %p150
    %s153 = sadd.s32 %s152, 1
    %p156 = scmp.eq.s32.totalorder %s13, 1
    %p157 = scmp.ne.s32.totalorder %s152, %s154
    %p158 = scmp.eq.s32.totalorder %s13, 0
    %p159 = por %p157, %p158
    %p160 = scmp.ne.s32.totalorder %s152, %s154
    %p161 = scmp.eq.s32.totalorder %s18, 1
    %p162 = por %p160, %p161
    %p163 = scmp.ne.s32.totalorder %s154, %s155
    %p164 = scmp.eq.s32.totalorder %s18, 0
    %p165 = por %p163, %p164
    %p166 = scmp.ne.s32.totalorder %s154, %s155
    %p167 = scmp.eq.s32.totalorder %s19, 1
    %p168 = por %p166, %p167
    %p170 = scmp.ne.s32.totalorder %s155, %s169
    %p171 = scmp.eq.s32.totalorder %s19, 0
    %p172 = por %p170, %p171
    %s173 = ssub.s32 %s13, %s20
    %p174 = scmp.eq.s32.totalorder %s173, 0
    %s176 = sadd.s32 %s175, 1
    %s177 = scalar_select %p174, %s175, %s176
    %p180 = pneg %p174
    %p181 = scmp.eq.s32.totalorder %s13, 1
    %p182 = por %p180, %p181
    %p183 = scmp.ne.s32.totalorder %s175, %s178
    %p184 = scmp.eq.s32.totalorder %s13, 0
    %p185 = por %p183, %p184
    %p186 = scmp.ne.s32.totalorder %s175, %s178
    %p187 = scmp.eq.s32.totalorder %s18, 1
    %p188 = por %p186, %p187
    %p189 = scmp.ne.s32.totalorder %s178, %s179
    %p190 = scmp.eq.s32.totalorder %s18, 0
    %p191 = por %p189, %p190
    %p192 = scmp.ne.s32.totalorder %s178, %s179
    %p193 = scmp.eq.s32.totalorder %s19, 1
    %p194 = por %p192, %p193
    %p196 = scmp.ne.s32.totalorder %s179, %s195
    %p197 = scmp.eq.s32.totalorder %s19, 0
    %p198 = por %p196, %p197
    %p199 = scmp.le.s32.totalorder 1, %s13
    %p200 = scmp.lt.s32.totalorder %s13, 3
    %p201 = pnand %p199, %p200
    %p202 = pneg %p201
    // Predicated region
    $region9: #{down_forward.1} parent=5 // pred_check
      _
    $region10: #{down_forward.1} parent=5 // pred_check_branch
      %204 = sbr.rel (%p201) target = $region12
    $region11: #{down_forward.1} parent=5 // pred_region
      %s205 = ssub.s32 %s13, 1
      // Predicated region
      $region13: #{down_forward.1} parent=11 // pred_check
        %p206 = pneg %p60
      $region14: #{down_forward.1} parent=11 // pred_check_branch
        %208 = sbr.rel (%p206) target = $region16
      $region15: #{down_forward.1} parent=11 // pred_region
        _
      $region16: #{down_forward.1} parent=11 // pred_fallthru
        _
      // Predicated region
      $region17: #{down_forward.1} parent=11 // pred_check
        %p209 = pneg %p81
      $region18: #{down_forward.1} parent=11 // pred_check_branch
        %211 = sbr.rel (%p209) target = $region20
      $region19: #{down_forward.1} parent=11 // pred_region
        _
      $region20: #{down_forward.1} parent=11 // pred_fallthru
        _
      // Predicated region
      $region21: #{down_forward.1} parent=11 // pred_check
        %p212 = pneg %p102
      $region22: #{down_forward.1} parent=11 // pred_check_branch
        %214 = sbr.rel (%p212) target = $region24
      $region23: #{down_forward.1} parent=11 // pred_region
        _
      $region24: #{down_forward.1} parent=11 // pred_fallthru
        _
      // Predicated region
      $region25: #{down_forward.1} parent=11 // pred_check
        %p215 = pneg %p123
      $region26: #{down_forward.1} parent=11 // pred_check_branch
        %217 = sbr.rel (%p215) target = $region28
      $region27: #{down_forward.1} parent=11 // pred_region
        _
      $region28: #{down_forward.1} parent=11 // pred_fallthru
        _
      // Predicated region
      $region29: #{down_forward.1} parent=11 // pred_check
        %p218 = pneg %p144
      $region30: #{down_forward.1} parent=11 // pred_check_branch
        %220 = sbr.rel (%p218) target = $region32
      $region31: #{down_forward.1} parent=11 // pred_region
        _
      $region32: #{down_forward.1} parent=11 // pred_fallthru
        _
      // Predicated region
      $region33: #{down_forward.1} parent=11 // pred_check
        %p221 = pneg %p165
      $region34: #{down_forward.1} parent=11 // pred_check_branch
        %223 = sbr.rel (%p221) target = $region36
      $region35: #{down_forward.1} parent=11 // pred_region
        _
      $region36: #{down_forward.1} parent=11 // pred_fallthru
        _
    $region12: #{down_forward.1} parent=5 // pred_fallthru
      _
    %p224 = scmp.lt.s32.totalorder %s13, 2
    // Predicated region
    $region37: #{down_forward.1} parent=5 // pred_check
      %p225 = pneg %p224
    $region38: #{down_forward.1} parent=5 // pred_check_branch
      %227 = sbr.rel (%p225) target = $region40
    $region39: #{down_forward.1} parent=5 // pred_region
      // Predicated region
      $region41: #{down_forward.1} parent=39 // pred_check
        %p228 = pneg %p33
      $region42: #{down_forward.1} parent=39 // pred_check_branch
        %230 = sbr.rel (%p228) target = $region44
      $region43: #{down_forward.1} parent=39 // pred_region
        %p231 = scmp.lt.s32.totalorder %s13, 1
        %s232 = scalar_select %p231, %s13, 1
        %s233 = smul.addr %s232, 16
        %s234 = smul.addr %s233, 8
        %s235 = scalar_lea.vmem %s0, %s234
      $region44: #{down_forward.1} parent=39 // pred_fallthru
        _
    $region40: #{down_forward.1} parent=5 // pred_fallthru
      _
    %p236 = scmp.le.s32.totalorder 1, %s13
    %p237 = scmp.lt.s32.totalorder %s13, 3
    %p238 = pnand %p236, %p237
    %p239 = pneg %p238
    // Predicated region
    $region45: #{down_forward.1} parent=5 // pred_check
      _
    $region46: #{down_forward.1} parent=5 // pred_check_branch
      %241 = sbr.rel (%p238) target = $region48
    $region47: #{down_forward.1} parent=5 // pred_region
      %s242 = ssub.s32 %s13, 1
      %p243 = scmp.lt.s32.totalorder %s18, 1
      %s244 = scalar_select %p243, %s18, 1
      %s245 = smul.addr %s244, 16
      %s246 = smul.addr %s245, 8
      %s247 = scalar_lea.vmem %s0, %s246
      %p248 = pneg %p39
      %p249 = pneg %p36
      %p250 = pneg %p60
      %p251 = pneg %p57
      %p252 = pneg %p81
      %p253 = pneg %p78
      %p254 = pneg %p102
      %p255 = pneg %p99
      %p256 = pneg %p123
      %p257 = pneg %p120
      %p258 = pneg %p144
      %p259 = pneg %p141
      %p260 = pneg %p165
      %p261 = pneg %p162
      %p262 = pneg %p191
      %p263 = pneg %p188
      %p264 = scmp.lt.s32.totalorder %s18, 1
      %s265 = scalar_select %p264, %s18, 1
      %s266 = smul.addr %s265, 8
      %s267 = smul.addr %s266, 8
      %s268 = scalar_lea.vmem %s7, %s267
      %p269 = scmp.lt.s32.totalorder %s18, 1
      %s270 = scalar_select %p269, %s18, 1
      %s271 = smul.addr %s270, 16
      %s272 = smul.addr %s271, 8
      %s273 = scalar_lea.vmem %s0, %s272
      %p274 = scmp.lt.s32.totalorder %s18, 1
      %s275 = scalar_select %p274, %s18, 1
      %s276 = smul.addr %s275, 8
      %s277 = smul.addr %s276, 8
      %s278 = scalar_lea.vmem %s7, %s277
      %v280 = vld [vmem:[%s273] sm:$0xff]
      %v281 = vld [vmem:[%s273 + $0x8] sm:$0xff]
      %v282 = vld [vmem:[%s273 + $0x10] sm:$0xff]
      %v283 = vld [vmem:[%s273 + $0x18] sm:$0xff]
      %v284 = vld [vmem:[%s273 + $0x20] sm:$0xff]
      %v285 = vld [vmem:[%s273 + $0x28] sm:$0xff]
      %v286 = vld [vmem:[%s273 + $0x30] sm:$0xff]
      %v287 = vld [vmem:[%s273 + $0x38] sm:$0xff]
      %v288 = vld [vmem:[%s273 + $0x40] sm:$0xff]
      %v289 = vld [vmem:[%s273 + $0x48] sm:$0xff]
      %v290 = vld [vmem:[%s273 + $0x50] sm:$0xff]
      %v291 = vld [vmem:[%s273 + $0x58] sm:$0xff]
      %v292 = vld [vmem:[%s273 + $0x60] sm:$0xff]
      %v293 = vld [vmem:[%s273 + $0x68] sm:$0xff]
      %v294 = vld [vmem:[%s273 + $0x70] sm:$0xff]
      %v295 = vld [vmem:[%s273 + $0x78] sm:$0xff]
      %v296 = vmax.f32 %v280, %v281
      %v297 = vmax.f32 %v282, %v283
      %v298 = vmax.f32 %v284, %v285
      %v299 = vmax.f32 %v286, %v287
      %v300 = vmax.f32 %v288, %v289
      %v301 = vmax.f32 %v290, %v291
      %v302 = vmax.f32 %v292, %v293
      %v303 = vmax.f32 %v294, %v295
      %312 = vrot.lane.b32.xlu0 %v296, 124
      %v313 = vpop.permute.xlu0 %312
      %314 = vrot.lane.b32.xlu0 %v297, 124
      %v315 = vpop.permute.xlu0 %314
      %316 = vrot.lane.b32.xlu0 %v298, 124
      %v317 = vpop.permute.xlu0 %316
      %318 = vrot.lane.b32.xlu0 %v299, 124
      %v319 = vpop.permute.xlu0 %318
      %320 = vrot.lane.b32.xlu0 %v300, 124
      %v321 = vpop.permute.xlu0 %320
      %322 = vrot.lane.b32.xlu0 %v301, 124
      %v323 = vpop.permute.xlu0 %322
      %324 = vrot.lane.b32.xlu0 %v302, 124
      %v325 = vpop.permute.xlu0 %324
      %326 = vrot.lane.b32.xlu0 %v303, 124
      %v327 = vpop.permute.xlu0 %326
      %v336 = vmax.f32 %v296, %v313
      %v337 = vmax.f32 %v297, %v315
      %v338 = vmax.f32 %v298, %v317
      %v339 = vmax.f32 %v299, %v319
      %v340 = vmax.f32 %v300, %v321
      %v341 = vmax.f32 %v301, %v323
      %v342 = vmax.f32 %v302, %v325
      %v343 = vmax.f32 %v303, %v327
      %344 = vst [vmem:[#allocation2] sm:$0xff] 0.0
      %345 = vst [vmem:[#allocation2 + $0x8] sm:$0x3] 0.0
      %346 = vst [vmem:[#allocation2 + $0x10] sm:$0xff] 0.0
      %347 = vst [vmem:[#allocation2 + $0x18] sm:$0x3] 0.0
      %348 = vst [vmem:[#allocation2 + $0x20] sm:$0xff] 0.0
      %349 = vst [vmem:[#allocation2 + $0x28] sm:$0x3] 0.0
      %350 = vst [vmem:[#allocation2 + $0x30] sm:$0xff] 0.0
      %351 = vst [vmem:[#allocation2 + $0x38] sm:$0x3] 0.0
      %352 = vst [vmem:[#allocation2 + $0x40] sm:$0xff] 0.0
      %353 = vst [vmem:[#allocation2 + $0x48] sm:$0x3] 0.0
      %354 = vst [vmem:[#allocation2 + $0x50] sm:$0xff] 0.0
      %355 = vst [vmem:[#allocation2 + $0x58] sm:$0x3] 0.0
      %356 = vst [vmem:[#allocation2 + $0x60] sm:$0xff] 0.0
      %357 = vst [vmem:[#allocation2 + $0x68] sm:$0x3] 0.0
      %358 = vst [vmem:[#allocation2 + $0x70] sm:$0xff] 0.0
      %359 = vst [vmem:[#allocation2 + $0x78] sm:$0x3] 0.0
      %360 = vst [vmem:[#allocation2 + $0x80] sm:$0xff] 0.0
      %361 = vst [vmem:[#allocation2 + $0x88] sm:$0x3] 0.0
      %362 = vst [vmem:[#allocation2 + $0x90] sm:$0xff] 0.0
      %363 = vst [vmem:[#allocation2 + $0x98] sm:$0x3] 0.0
      %s364 = scalar_lea.vmem [#allocation2], 16
      %vm365 = vcmask 31744
      %366 = vst.msk [vmem:[%s364 + $0x1] sm:$0xff] %vm365, %v336
      %367 = vst.msk [vmem:[%s364 + $0x11] sm:$0xff] %vm365, %v337
      %368 = vst.msk [vmem:[%s364 + $0x21] sm:$0xff] %vm365, %v338
      %369 = vst.msk [vmem:[%s364 + $0x31] sm:$0xff] %vm365, %v339
      %370 = vst.msk [vmem:[%s364 + $0x41] sm:$0xff] %vm365, %v340
      %371 = vst.msk [vmem:[%s364 + $0x51] sm:$0xff] %vm365, %v341
      %372 = vst.msk [vmem:[%s364 + $0x61] sm:$0xff] %vm365, %v342
      %373 = vst.msk [vmem:[%s364 + $0x71] sm:$0xff] %vm365, %v343
      %v374 = vld [vmem:[#allocation2] sm:$0xff]
      %v375 = vld [vmem:[#allocation2 + $0x10] sm:$0xff]
      %v376 = vld [vmem:[#allocation2 + $0x20] sm:$0xff]
      %v377 = vld [vmem:[#allocation2 + $0x30] sm:$0xff]
      %v378 = vld [vmem:[#allocation2 + $0x40] sm:$0xff]
      %v379 = vld [vmem:[#allocation2 + $0x50] sm:$0xff]
      %v380 = vld [vmem:[#allocation2 + $0x60] sm:$0xff]
      %v381 = vld [vmem:[#allocation2 + $0x70] sm:$0xff]
      %v382 = vpack.c.bf16 %v375, %v374
      %v383 = vpack.c.bf16 %v377, %v376
      %v384 = vpack.c.bf16 %v379, %v378
      %v385 = vpack.c.bf16 %v381, %v380
      %v386 = vld [vmem:[#allocation2 + $0x1] sm:$0xff]
      %v387 = vld [vmem:[#allocation2 + $0x11] sm:$0xff]
      %v388 = vld [vmem:[#allocation2 + $0x21] sm:$0xff]
      %v389 = vld [vmem:[#allocation2 + $0x31] sm:$0xff]
      %v390 = vld [vmem:[#allocation2 + $0x41] sm:$0xff]
      %v391 = vld [vmem:[#allocation2 + $0x51] sm:$0xff]
      %v392 = vld [vmem:[#allocation2 + $0x61] sm:$0xff]
      %v393 = vld [vmem:[#allocation2 + $0x71] sm:$0xff]
      %v394 = vpack.c.bf16 %v387, %v386
      %v395 = vpack.c.bf16 %v389, %v388
      %v396 = vpack.c.bf16 %v391, %v390
      %v397 = vpack.c.bf16 %v393, %v392
      %v398 = vld [vmem:[#allocation2 + $0x2] sm:$0xff]
      %v399 = vld [vmem:[#allocation2 + $0x12] sm:$0xff]
      %v400 = vld [vmem:[#allocation2 + $0x22] sm:$0xff]
      %v401 = vld [vmem:[#allocation2 + $0x32] sm:$0xff]
      %v402 = vld [vmem:[#allocation2 + $0x42] sm:$0xff]
      %v403 = vld [vmem:[#allocation2 + $0x52] sm:$0xff]
      %v404 = vld [vmem:[#allocation2 + $0x62] sm:$0xff]
      %v405 = vld [vmem:[#allocation2 + $0x72] sm:$0xff]
      %v406 = vpack.c.bf16 %v399, %v398
      %v407 = vpack.c.bf16 %v401, %v400
      %v408 = vpack.c.bf16 %v403, %v402
      %v409 = vpack.c.bf16 %v405, %v404
      %v410 = vld [vmem:[%s364] sm:$0xff]
      %v411 = vld [vmem:[%s364 + $0x10] sm:$0xff]
      %v412 = vld [vmem:[%s364 + $0x20] sm:$0xff]
      %v413 = vld [vmem:[%s364 + $0x30] sm:$0xff]
      %v414 = vld [vmem:[%s364 + $0x40] sm:$0xff]
      %v415 = vld [vmem:[%s364 + $0x50] sm:$0xff]
      %v416 = vld [vmem:[%s364 + $0x60] sm:$0xff]
      %v417 = vld [vmem:[%s364 + $0x70] sm:$0xff]
      %v418 = vpack.c.bf16 %v411, %v410
      %v419 = vpack.c.bf16 %v413, %v412
      %v420 = vpack.c.bf16 %v415, %v414
      %v421 = vpack.c.bf16 %v417, %v416
      %v422 = vld [vmem:[%s364 + $0x1] sm:$0xff]
      %v423 = vld [vmem:[%s364 + $0x11] sm:$0xff]
      %v424 = vld [vmem:[%s364 + $0x21] sm:$0xff]
      %v425 = vld [vmem:[%s364 + $0x31] sm:$0xff]
      %v426 = vld [vmem:[%s364 + $0x41] sm:$0xff]
      %v427 = vld [vmem:[%s364 + $0x51] sm:$0xff]
      %v428 = vld [vmem:[%s364 + $0x61] sm:$0xff]
      %v429 = vld [vmem:[%s364 + $0x71] sm:$0xff]
      %v430 = vpack.c.bf16 %v423, %v422
      %v431 = vpack.c.bf16 %v425, %v424
      %v432 = vpack.c.bf16 %v427, %v426
      %v433 = vpack.c.bf16 %v429, %v428
      %v434 = vld [vmem:[%s364 + $0x2] sm:$0xff]
      %v435 = vld [vmem:[%s364 + $0x12] sm:$0xff]
      %v436 = vld [vmem:[%s364 + $0x22] sm:$0xff]
      %v437 = vld [vmem:[%s364 + $0x32] sm:$0xff]
      %v438 = vld [vmem:[%s364 + $0x42] sm:$0xff]
      %v439 = vld [vmem:[%s364 + $0x52] sm:$0xff]
      %v440 = vld [vmem:[%s364 + $0x62] sm:$0xff]
      %v441 = vld [vmem:[%s364 + $0x72] sm:$0xff]
      %v442 = vpack.c.bf16 %v435, %v434
      %v443 = vpack.c.bf16 %v437, %v436
      %v444 = vpack.c.bf16 %v439, %v438
      %v445 = vpack.c.bf16 %v441, %v440
      %s446 = scalar_lea.vmem [#allocation2], 32
      %v447 = vld [vmem:[%s446] sm:$0xff]
      %v448 = vld [vmem:[%s446 + $0x10] sm:$0xff]
      %v449 = vld [vmem:[%s446 + $0x20] sm:$0xff]
      %v450 = vld [vmem:[%s446 + $0x30] sm:$0xff]
      %v451 = vld [vmem:[%s446 + $0x40] sm:$0xff]
      %v452 = vld [vmem:[%s446 + $0x50] sm:$0xff]
      %v453 = vld [vmem:[%s446 + $0x60] sm:$0xff]
      %v454 = vld [vmem:[%s446 + $0x70] sm:$0xff]
      %v455 = vpack.c.bf16 %v448, %v447
      %v456 = vpack.c.bf16 %v450, %v449
      %v457 = vpack.c.bf16 %v452, %v451
      %v458 = vpack.c.bf16 %v454, %v453
      %v459 = vld [vmem:[%s446 + $0x1] sm:$0xff]
      %v460 = vld [vmem:[%s446 + $0x11] sm:$0xff]
      %v461 = vld [vmem:[%s446 + $0x21] sm:$0xff]
      %v462 = vld [vmem:[%s446 + $0x31] sm:$0xff]
      %v463 = vld [vmem:[%s446 + $0x41] sm:$0xff]
      %v464 = vld [vmem:[%s446 + $0x51] sm:$0xff]
      %v465 = vld [vmem:[%s446 + $0x61] sm:$0xff]
      %v466 = vld [vmem:[%s446 + $0x71] sm:$0xff]
      %v467 = vpack.c.bf16 %v460, %v459
      %v468 = vpack.c.bf16 %v462, %v461
      %v469 = vpack.c.bf16 %v464, %v463
      %v470 = vpack.c.bf16 %v466, %v465
      %v471 = vld [vmem:[%s446 + $0x2] sm:$0xff]
      %v472 = vld [vmem:[%s446 + $0x12] sm:$0xff]
      %v473 = vld [vmem:[%s446 + $0x22] sm:$0xff]
      %v474 = vld [vmem:[%s446 + $0x32] sm:$0xff]
      %v475 = vld [vmem:[%s446 + $0x42] sm:$0xff]
      %v476 = vld [vmem:[%s446 + $0x52] sm:$0xff]
      %v477 = vld [vmem:[%s446 + $0x62] sm:$0xff]
      %v478 = vld [vmem:[%s446 + $0x72] sm:$0xff]
      %v479 = vpack.c.bf16 %v472, %v471
      %v480 = vpack.c.bf16 %v474, %v473
      %v481 = vpack.c.bf16 %v476, %v475
      %v482 = vpack.c.bf16 %v478, %v477
      %v483 = vld [vmem:[%s1] sm:$0xf]
      %v484 = vld [vmem:[%s1 + $0x4] sm:$0xf]
      %v485 = vld [vmem:[%s1 + $0x8] sm:$0xf]
      %v486 = vld [vmem:[%s1 + $0xc] sm:$0xf]
      %v487 = vld [vmem:[%s1 + $0x10] sm:$0xf]
      %v488 = vld [vmem:[%s1 + $0x14] sm:$0xf]
      %v489 = vld [vmem:[%s1 + $0x18] sm:$0xf]
      %v490 = vld [vmem:[%s1 + $0x1c] sm:$0xf]
      %v491 = vld [vmem:[%s1 + $0x20] sm:$0xf]
      %v492 = vld [vmem:[%s1 + $0x24] sm:$0xf]
      %v493 = vld [vmem:[%s1 + $0x28] sm:$0xf]
      %v494 = vld [vmem:[%s1 + $0x2c] sm:$0xf]
      %v495 = vld [vmem:[%s1 + $0x30] sm:$0xf]
      %v496 = vld [vmem:[%s1 + $0x34] sm:$0xf]
      %v497 = vld [vmem:[%s1 + $0x38] sm:$0xf]
      %v498 = vld [vmem:[%s1 + $0x3c] sm:$0xf]
      %v499 = vld [vmem:[%s1 + $0x40] sm:$0xf]
      %v500 = vld [vmem:[%s1 + $0x44] sm:$0xf]
      %v501 = vld [vmem:[%s1 + $0x48] sm:$0xf]
      %v502 = vld [vmem:[%s1 + $0x4c] sm:$0xf]
      %v503 = vld [vmem:[%s1 + $0x50] sm:$0xf]
      %v504 = vld [vmem:[%s1 + $0x54] sm:$0xf]
      %v505 = vld [vmem:[%s1 + $0x58] sm:$0xf]
      %v506 = vld [vmem:[%s1 + $0x5c] sm:$0xf]
      %v507 = vld [vmem:[%s1 + $0x60] sm:$0xf]
      %v508 = vld [vmem:[%s1 + $0x64] sm:$0xf]
      %v509 = vld [vmem:[%s1 + $0x68] sm:$0xf]
      %v510 = vld [vmem:[%s1 + $0x6c] sm:$0xf]
      %v511 = vld [vmem:[%s1 + $0x70] sm:$0xf]
      %v512 = vld [vmem:[%s1 + $0x74] sm:$0xf]
      %v513 = vld [vmem:[%s1 + $0x78] sm:$0xf]
      %v514 = vld [vmem:[%s1 + $0x7c] sm:$0xf]
      %v515 = vld [vmem:[%s1 + $0x80] sm:$0xf]
      %v516 = vld [vmem:[%s1 + $0x84] sm:$0xf]
      %v517 = vld [vmem:[%s1 + $0x88] sm:$0xf]
      %v518 = vld [vmem:[%s1 + $0x8c] sm:$0xf]
      %v519 = vld [vmem:[%s1 + $0x90] sm:$0xf]
      %v520 = vld [vmem:[%s1 + $0x94] sm:$0xf]
      %v521 = vld [vmem:[%s1 + $0x98] sm:$0xf]
      %v522 = vld [vmem:[%s1 + $0x9c] sm:$0xf]
      %v523 = vld [vmem:[%s1 + $0xa0] sm:$0xf]
      %v524 = vld [vmem:[%s1 + $0xa4] sm:$0xf]
      %v525 = vld [vmem:[%s1 + $0xa8] sm:$0xf]
      %v526 = vld [vmem:[%s1 + $0xac] sm:$0xf]
      %v527 = vld [vmem:[%s1 + $0xb0] sm:$0xf]
      %v528 = vld [vmem:[%s1 + $0xb4] sm:$0xf]
      %v529 = vld [vmem:[%s1 + $0xb8] sm:$0xf]
      %v530 = vld [vmem:[%s1 + $0xbc] sm:$0xf]
      %v531 = vld [vmem:[%s1 + $0xc0] sm:$0xf]
      %v532 = vld [vmem:[%s1 + $0xc4] sm:$0xf]
      %v533 = vld [vmem:[%s1 + $0xc8] sm:$0xf]
      %v534 = vld [vmem:[%s1 + $0xcc] sm:$0xf]
      %v535 = vld [vmem:[%s1 + $0xd0] sm:$0xf]
      %v536 = vld [vmem:[%s1 + $0xd4] sm:$0xf]
      %v537 = vld [vmem:[%s1 + $0xd8] sm:$0xf]
      %v538 = vld [vmem:[%s1 + $0xdc] sm:$0xf]
      %v539 = vld [vmem:[%s1 + $0xe0] sm:$0xf]
      %v540 = vld [vmem:[%s1 + $0xe4] sm:$0xf]
      %v541 = vld [vmem:[%s1 + $0xe8] sm:$0xf]
      %v542 = vld [vmem:[%s1 + $0xec] sm:$0xf]
      %v543 = vld [vmem:[%s1 + $0xf0] sm:$0xf]
      %v544 = vld [vmem:[%s1 + $0xf4] sm:$0xf]
      %v545 = vld [vmem:[%s1 + $0xf8] sm:$0xf]
      %v546 = vld [vmem:[%s1 + $0xfc] sm:$0xf]
      %v547 = vld [vmem:[%s1 + $0x100] sm:$0xf]
      %v548 = vld [vmem:[%s1 + $0x104] sm:$0xf]
      %v549 = vld [vmem:[%s1 + $0x108] sm:$0xf]
      %v550 = vld [vmem:[%s1 + $0x10c] sm:$0xf]
      %v551 = vld [vmem:[%s1 + $0x110] sm:$0xf]
      %v552 = vld [vmem:[%s1 + $0x114] sm:$0xf]
      %v553 = vld [vmem:[%s1 + $0x118] sm:$0xf]
      %v554 = vld [vmem:[%s1 + $0x11c] sm:$0xf]
      %v555 = vld [vmem:[%s1 + $0x120] sm:$0xf]
      %v556 = vld [vmem:[%s1 + $0x124] sm:$0xf]
      %v557 = vld [vmem:[%s1 + $0x128] sm:$0xf]
      %v558 = vld [vmem:[%s1 + $0x12c] sm:$0xf]
      %v559 = vld [vmem:[%s1 + $0x130] sm:$0xf]
      %v560 = vld [vmem:[%s1 + $0x134] sm:$0xf]
      %v561 = vld [vmem:[%s1 + $0x138] sm:$0xf]
      %v562 = vld [vmem:[%s1 + $0x13c] sm:$0xf]
      %v563 = vld [vmem:[%s1 + $0x140] sm:$0xf]
      %v564 = vld [vmem:[%s1 + $0x144] sm:$0xf]
      %v565 = vld [vmem:[%s1 + $0x148] sm:$0xf]
      %v566 = vld [vmem:[%s1 + $0x14c] sm:$0xf]
      %v567 = vld [vmem:[%s1 + $0x150] sm:$0xf]
      %v568 = vld [vmem:[%s1 + $0x154] sm:$0xf]
      %v569 = vld [vmem:[%s1 + $0x158] sm:$0xf]
      %v570 = vld [vmem:[%s1 + $0x15c] sm:$0xf]
      %v571 = vld [vmem:[%s1 + $0x160] sm:$0xf]
      %v572 = vld [vmem:[%s1 + $0x164] sm:$0xf]
      %v573 = vld [vmem:[%s1 + $0x168] sm:$0xf]
      %v574 = vld [vmem:[%s1 + $0x16c] sm:$0xf]
      %v575 = vld [vmem:[%s1 + $0x170] sm:$0xf]
      %v576 = vld [vmem:[%s1 + $0x174] sm:$0xf]
      %v577 = vld [vmem:[%s1 + $0x178] sm:$0xf]
      %v578 = vld [vmem:[%s1 + $0x17c] sm:$0xf]
      %v579 = vld [vmem:[%s1 + $0x180] sm:$0xf]
      %v580 = vld [vmem:[%s1 + $0x184] sm:$0xf]
      %v581 = vld [vmem:[%s1 + $0x188] sm:$0xf]
      %v582 = vld [vmem:[%s1 + $0x18c] sm:$0xf]
      %v583 = vld [vmem:[%s1 + $0x190] sm:$0xf]
      %v584 = vld [vmem:[%s1 + $0x194] sm:$0xf]
      %v585 = vld [vmem:[%s1 + $0x198] sm:$0xf]
      %v586 = vld [vmem:[%s1 + $0x19c] sm:$0xf]
      %v587 = vld [vmem:[%s1 + $0x1a0] sm:$0xf]
      %v588 = vld [vmem:[%s1 + $0x1a4] sm:$0xf]
      %v589 = vld [vmem:[%s1 + $0x1a8] sm:$0xf]
      %v590 = vld [vmem:[%s1 + $0x1ac] sm:$0xf]
      %v591 = vld [vmem:[%s1 + $0x1b0] sm:$0xf]
      %v592 = vld [vmem:[%s1 + $0x1b4] sm:$0xf]
      %v593 = vld [vmem:[%s1 + $0x1b8] sm:$0xf]
      %v594 = vld [vmem:[%s1 + $0x1bc] sm:$0xf]
      %v595 = vld [vmem:[%s1 + $0x1c0] sm:$0xf]
      %v596 = vld [vmem:[%s1 + $0x1c4] sm:$0xf]
      %v597 = vld [vmem:[%s1 + $0x1c8] sm:$0xf]
      %v598 = vld [vmem:[%s1 + $0x1cc] sm:$0xf]
      %v599 = vld [vmem:[%s1 + $0x1d0] sm:$0xf]
      %v600 = vld [vmem:[%s1 + $0x1d4] sm:$0xf]
      %v601 = vld [vmem:[%s1 + $0x1d8] sm:$0xf]
      %v602 = vld [vmem:[%s1 + $0x1dc] sm:$0xf]
      %v603 = vld [vmem:[%s1 + $0x1e0] sm:$0xf]
      %v604 = vld [vmem:[%s1 + $0x1e4] sm:$0xf]
      %v605 = vld [vmem:[%s1 + $0x1e8] sm:$0xf]
      %v606 = vld [vmem:[%s1 + $0x1ec] sm:$0xf]
      %v607 = vld [vmem:[%s1 + $0x1f0] sm:$0xf]
      %v608 = vld [vmem:[%s1 + $0x1f4] sm:$0xf]
      %v609 = vld [vmem:[%s1 + $0x1f8] sm:$0xf]
      %v610 = vld [vmem:[%s1 + $0x1fc] sm:$0xf]
      %v611 = vld [vmem:[%s1 + $0x200] sm:$0xf]
      %v612 = vld [vmem:[%s1 + $0x204] sm:$0xf]
      %v613 = vld [vmem:[%s1 + $0x208] sm:$0xf]
      %v614 = vld [vmem:[%s1 + $0x20c] sm:$0xf]
      %v615 = vld [vmem:[%s1 + $0x210] sm:$0xf]
      %v616 = vld [vmem:[%s1 + $0x214] sm:$0xf]
      %v617 = vld [vmem:[%s1 + $0x218] sm:$0xf]
      %v618 = vld [vmem:[%s1 + $0x21c] sm:$0xf]
      %v619 = vld [vmem:[%s1 + $0x220] sm:$0xf]
      %v620 = vld [vmem:[%s1 + $0x224] sm:$0xf]
      %v621 = vld [vmem:[%s1 + $0x228] sm:$0xf]
      %v622 = vld [vmem:[%s1 + $0x22c] sm:$0xf]
      %v623 = vld [vmem:[%s1 + $0x230] sm:$0xf]
      %v624 = vld [vmem:[%s1 + $0x234] sm:$0xf]
      %v625 = vld [vmem:[%s1 + $0x238] sm:$0xf]
      %v626 = vld [vmem:[%s1 + $0x23c] sm:$0xf]
      %v771 = vunpack.c.l.b16 %v483
      %v772 = vunpack.c.l.b16 %v484
      %v773 = vunpack.c.l.b16 %v485
      %v774 = vunpack.c.l.b16 %v486
      %v775 = vunpack.c.l.b16 %v487
      %v776 = vunpack.c.l.b16 %v488
      %v777 = vunpack.c.l.b16 %v489
      %v778 = vunpack.c.l.b16 %v490
      %v779 = vunpack.c.l.b16 %v491
      %v780 = vunpack.c.l.b16 %v492
      %v781 = vunpack.c.l.b16 %v493
      %v782 = vunpack.c.l.b16 %v494
      %v783 = vunpack.c.l.b16 %v495
      %v784 = vunpack.c.l.b16 %v496
      %v785 = vunpack.c.l.b16 %v497
      %v786 = vunpack.c.l.b16 %v498
      %v787 = vunpack.c.l.b16 %v499
      %v788 = vunpack.c.l.b16 %v500
      %v789 = vunpack.c.l.b16 %v501
      %v790 = vunpack.c.l.b16 %v502
      %v791 = vunpack.c.l.b16 %v503
      %v792 = vunpack.c.l.b16 %v504
      %v793 = vunpack.c.l.b16 %v505
      %v794 = vunpack.c.l.b16 %v506
      %v795 = vunpack.c.l.b16 %v507
      %v796 = vunpack.c.l.b16 %v508
      %v797 = vunpack.c.l.b16 %v509
      %v798 = vunpack.c.l.b16 %v510
      %v799 = vunpack.c.l.b16 %v511
      %v800 = vunpack.c.l.b16 %v512
      %v801 = vunpack.c.l.b16 %v513
      %v802 = vunpack.c.l.b16 %v514
      %v803 = vunpack.c.l.b16 %v515
      %v804 = vunpack.c.l.b16 %v516
      %v805 = vunpack.c.l.b16 %v517
      %v806 = vunpack.c.l.b16 %v518
      %v807 = vunpack.c.l.b16 %v519
      %v808 = vunpack.c.l.b16 %v520
      %v809 = vunpack.c.l.b16 %v521
      %v810 = vunpack.c.l.b16 %v522
      %v811 = vunpack.c.l.b16 %v523
      %v812 = vunpack.c.l.b16 %v524
      %v813 = vunpack.c.l.b16 %v525
      %v814 = vunpack.c.l.b16 %v526
      %v815 = vunpack.c.l.b16 %v527
      %v816 = vunpack.c.l.b16 %v528
      %v817 = vunpack.c.l.b16 %v529
      %v818 = vunpack.c.l.b16 %v530
      %v819 = vunpack.c.l.b16 %v531
      %v820 = vunpack.c.l.b16 %v532
      %v821 = vunpack.c.l.b16 %v533
      %v822 = vunpack.c.l.b16 %v534
      %v823 = vunpack.c.l.b16 %v535
      %v824 = vunpack.c.l.b16 %v536
      %v825 = vunpack.c.l.b16 %v537
      %v826 = vunpack.c.l.b16 %v538
      %v827 = vunpack.c.l.b16 %v539
      %v828 = vunpack.c.l.b16 %v540
      %v829 = vunpack.c.l.b16 %v541
      %v830 = vunpack.c.l.b16 %v542
      %v831 = vunpack.c.l.b16 %v543
      %v832 = vunpack.c.l.b16 %v544
      %v833 = vunpack.c.l.b16 %v545
      %v834 = vunpack.c.l.b16 %v546
      %v835 = vunpack.c.l.b16 %v547
      %v836 = vunpack.c.l.b16 %v548
      %v837 = vunpack.c.l.b16 %v549
      %v838 = vunpack.c.l.b16 %v550
      %v839 = vunpack.c.l.b16 %v551
      %v840 = vunpack.c.l.b16 %v552
      %v841 = vunpack.c.l.b16 %v553
      %v842 = vunpack.c.l.b16 %v554
      %v843 = vunpack.c.l.b16 %v555
      %v844 = vunpack.c.l.b16 %v556
      %v845 = vunpack.c.l.b16 %v557
      %v846 = vunpack.c.l.b16 %v558
      %v847 = vunpack.c.l.b16 %v559
      %v848 = vunpack.c.l.b16 %v560
      %v849 = vunpack.c.l.b16 %v561
      %v850 = vunpack.c.l.b16 %v562
      %v851 = vunpack.c.l.b16 %v563
      %v852 = vunpack.c.l.b16 %v564
      %v853 = vunpack.c.l.b16 %v565
      %v854 = vunpack.c.l.b16 %v566
      %v855 = vunpack.c.l.b16 %v567
      %v856 = vunpack.c.l.b16 %v568
      %v857 = vunpack.c.l.b16 %v569
      %v858 = vunpack.c.l.b16 %v570
      %v859 = vunpack.c.l.b16 %v571
      %v860 = vunpack.c.l.b16 %v572
      %v861 = vunpack.c.l.b16 %v573
      %v862 = vunpack.c.l.b16 %v574
      %v863 = vunpack.c.l.b16 %v575
      %v864 = vunpack.c.l.b16 %v576
      %v865 = vunpack.c.l.b16 %v577
      %v866 = vunpack.c.l.b16 %v578
      %v867 = vunpack.c.l.b16 %v579
      %v868 = vunpack.c.l.b16 %v580
      %v869 = vunpack.c.l.b16 %v581
      %v870 = vunpack.c.l.b16 %v582
      %v871 = vunpack.c.l.b16 %v583
      %v872 = vunpack.c.l.b16 %v584
      %v873 = vunpack.c.l.b16 %v585
      %v874 = vunpack.c.l.b16 %v586
      %v875 = vunpack.c.l.b16 %v587
      %v876 = vunpack.c.l.b16 %v588
      %v877 = vunpack.c.l.b16 %v589
      %v878 = vunpack.c.l.b16 %v590
      %v879 = vunpack.c.l.b16 %v591
      %v880 = vunpack.c.l.b16 %v592
      %v881 = vunpack.c.l.b16 %v593
      %v882 = vunpack.c.l.b16 %v594
      %v883 = vunpack.c.l.b16 %v595
      %v884 = vunpack.c.l.b16 %v596
      %v885 = vunpack.c.l.b16 %v597
      %v886 = vunpack.c.l.b16 %v598
      %v887 = vunpack.c.l.b16 %v599
      %v888 = vunpack.c.l.b16 %v600
      %v889 = vunpack.c.l.b16 %v601
      %v890 = vunpack.c.l.b16 %v602
      %v891 = vunpack.c.l.b16 %v603
      %v892 = vunpack.c.l.b16 %v604
      %v893 = vunpack.c.l.b16 %v605
      %v894 = vunpack.c.l.b16 %v606
      %v895 = vunpack.c.l.b16 %v607
      %v896 = vunpack.c.l.b16 %v608
      %v897 = vunpack.c.l.b16 %v609
      %v898 = vunpack.c.l.b16 %v610
      %v899 = vunpack.c.l.b16 %v611
      %v900 = vunpack.c.l.b16 %v612
      %v901 = vunpack.c.l.b16 %v613
      %v902 = vunpack.c.l.b16 %v614
      %v903 = vunpack.c.l.b16 %v615
      %v904 = vunpack.c.l.b16 %v616
      %v905 = vunpack.c.l.b16 %v617
      %v906 = vunpack.c.l.b16 %v618
      %v907 = vunpack.c.l.b16 %v619
      %v908 = vunpack.c.l.b16 %v620
      %v909 = vunpack.c.l.b16 %v621
      %v910 = vunpack.c.l.b16 %v622
      %v911 = vunpack.c.l.b16 %v623
      %v912 = vunpack.c.l.b16 %v624
      %v913 = vunpack.c.l.b16 %v625
      %v914 = vunpack.c.l.b16 %v626
      %v915 = vpack.c.b16 %v772, %v771
      %v916 = vpack.c.b16 %v774, %v773
      %v917 = vpack.c.b16 %v776, %v775
      %v918 = vpack.c.b16 %v778, %v777
      %v919 = vpack.c.b16 %v780, %v779
      %v920 = vpack.c.b16 %v782, %v781
      %v921 = vpack.c.b16 %v784, %v783
      %v922 = vpack.c.b16 %v786, %v785
      %v923 = vpack.c.b16 %v788, %v787
      %v924 = vpack.c.b16 %v790, %v789
      %v925 = vpack.c.b16 %v792, %v791
      %v926 = vpack.c.b16 %v794, %v793
      %v927 = vpack.c.b16 %v796, %v795
      %v928 = vpack.c.b16 %v798, %v797
      %v929 = vpack.c.b16 %v800, %v799
      %v930 = vpack.c.b16 %v802, %v801
      %v931 = vpack.c.b16 %v804, %v803
      %v932 = vpack.c.b16 %v806, %v805
      %v933 = vpack.c.b16 %v808, %v807
      %v934 = vpack.c.b16 %v810, %v809
      %v935 = vpack.c.b16 %v812, %v811
      %v936 = vpack.c.b16 %v814, %v813
      %v937 = vpack.c.b16 %v816, %v815
      %v938 = vpack.c.b16 %v818, %v817
      %v939 = vpack.c.b16 %v820, %v819
      %v940 = vpack.c.b16 %v822, %v821
      %v941 = vpack.c.b16 %v824, %v823
      %v942 = vpack.c.b16 %v826, %v825
      %v943 = vpack.c.b16 %v828, %v827
      %v944 = vpack.c.b16 %v830, %v829
      %v945 = vpack.c.b16 %v832, %v831
      %v946 = vpack.c.b16 %v834, %v833
      %v947 = vpack.c.b16 %v836, %v835
      %v948 = vpack.c.b16 %v838, %v837
      %v949 = vpack.c.b16 %v840, %v839
      %v950 = vpack.c.b16 %v842, %v841
      %v951 = vpack.c.b16 %v844, %v843
      %v952 = vpack.c.b16 %v846, %v845
      %v953 = vpack.c.b16 %v848, %v847
      %v954 = vpack.c.b16 %v850, %v849
      %v955 = vpack.c.b16 %v852, %v851
      %v956 = vpack.c.b16 %v854, %v853
      %v957 = vpack.c.b16 %v856, %v855
      %v958 = vpack.c.b16 %v858, %v857
      %v959 = vpack.c.b16 %v860, %v859
      %v960 = vpack.c.b16 %v862, %v861
      %v961 = vpack.c.b16 %v864, %v863
      %v962 = vpack.c.b16 %v866, %v865
      %v963 = vpack.c.b16 %v868, %v867
      %v964 = vpack.c.b16 %v870, %v869
      %v965 = vpack.c.b16 %v872, %v871
      %v966 = vpack.c.b16 %v874, %v873
      %v967 = vpack.c.b16 %v876, %v875
      %v968 = vpack.c.b16 %v878, %v877
      %v969 = vpack.c.b16 %v880, %v879
      %v970 = vpack.c.b16 %v882, %v881
      %v971 = vpack.c.b16 %v884, %v883
      %v972 = vpack.c.b16 %v886, %v885
      %v973 = vpack.c.b16 %v888, %v887
      %v974 = vpack.c.b16 %v890, %v889
      %v975 = vpack.c.b16 %v892, %v891
      %v976 = vpack.c.b16 %v894, %v893
      %v977 = vpack.c.b16 %v896, %v895
      %v978 = vpack.c.b16 %v898, %v897
      %v979 = vpack.c.b16 %v900, %v899
      %v980 = vpack.c.b16 %v902, %v901
      %v981 = vpack.c.b16 %v904, %v903
      %v982 = vpack.c.b16 %v906, %v905
      %v983 = vpack.c.b16 %v908, %v907
      %v984 = vpack.c.b16 %v910, %v909
      %v985 = vpack.c.b16 %v912, %v911
      %v986 = vpack.c.b16 %v914, %v913
      %1059 = vmatprep.subr.bf16.mxu0 0
      %1060 = vmatpush1.bf16.msra.mxu0 %v915
      %1061 = vmatprep.subr.bf16.mxu0 0
      %1062 = vmatpush1.bf16.msra.mxu0 %v916
      %1063 = vmatprep.subr.bf16.mxu0 0
      %1064 = vmatpush1.bf16.msra.mxu0 %v917
      %1065 = vmatprep.subr.bf16.mxu0 0
      %1066 = vmatpush1.bf16.msra.mxu0 %v918
      %1067 = vmatprep.subr.bf16.mxu0 0
      %1068 = vmatpush1.bf16.msra.mxu0 %v919
      %1069 = vmatprep.subr.bf16.mxu0 0
      %1070 = vmatpush1.bf16.msra.mxu0 %v920
      %1071 = vmatprep.subr.bf16.mxu0 0
      %1072 = vmatpush1.bf16.msra.mxu0 %v921
      %1073 = vmatprep.subr.bf16.mxu0 0
      %1074 = vmatpush1.bf16.msra.mxu0 %v922
      %1075 = vmatprep.subr.bf16.mxu0 0
      %1076 = vmatpush1.bf16.msra.mxu0 %v923
      %1077 = vmatprep.subr.bf16.mxu0 0
      %1078 = vmatpush1.bf16.msra.mxu0 %v924
      %1079 = vmatprep.subr.bf16.mxu0 0
      %1080 = vmatpush1.bf16.msra.mxu0 %v925
      %1081 = vmatprep.subr.bf16.mxu0 0
      %1082 = vmatpush1.bf16.msra.mxu0 %v926
      %1083 = vmatprep.subr.bf16.mxu0 0
      %1084 = vmatpush1.bf16.msra.mxu0 %v927
      %1085 = vmatprep.subr.bf16.mxu0 0
      %1086 = vmatpush1.bf16.msra.mxu0 %v928
      %1087 = vmatprep.subr.bf16.mxu0 0
      %1088 = vmatpush1.bf16.msra.mxu0 %v929
      %1089 = vmatprep.subr.bf16.mxu0 0
      %1090 = vmatpush1.bf16.msra.mxu0 %v930
      %1091 = vmatprep.mubr.bf16.mxu0 %v394
      %1092 = vmatmul.mubr.bf16.gmra.mrb[0].mxu0 %v382
      %v1093 = vpop.f32.mrb[0].mxu0
      %v1094 = vadd.f32 0.0, %v1093
      %v1095 = vpop.f32.mrb[0].mxu0
      %v1096 = vpop.f32.mrb[0].mxu0
      %v1097 = vadd.f32 0.0, %v1096
      %v1098 = vpop.f32.mrb[0].mxu0
      %1099 = vmatprep.mubr.bf16.mxu0 %v395
      %1100 = vmatmul.mubr.bf16.gmra.mrb[0].mxu0 %v383
      %v1101 = vpop.f32.mrb[0].mxu0
      %v1102 = vadd.f32 0.0, %v1101
      %v1103 = vpop.f32.mrb[0].mxu0
      %v1104 = vpop.f32.mrb[0].mxu0
      %v1105 = vadd.f32 0.0, %v1104
      %v1106 = vpop.f32.mrb[0].mxu0
      %1107 = vmatprep.mubr.bf16.mxu0 %v396
      %1108 = vmatmul.mubr.bf16.gmra.mrb[0].mxu0 %v384
      %v1109 = vpop.f32.mrb[0].mxu0
      %v1110 = vadd.f32 0.0, %v1109
      %v1111 = vpop.f32.mrb[0].mxu0
      %v1112 = vpop.f32.mrb[0].mxu0
      %v1113 = vadd.f32 0.0, %v1112
      %v1114 = vpop.f32.mrb[0].mxu0
      %1115 = vmatprep.mubr.bf16.mxu0 %v397
      %1116 = vmatmul.mubr.bf16.gmra.mrb[0].mxu0 %v385
      %v1117 = vpop.f32.mrb[0].mxu0
      %v1118 = vadd.f32 0.0, %v1117
      %v1119 = vpop.f32.mrb[0].mxu0
      %v1120 = vpop.f32.mrb[0].mxu0
      %v1121 = vadd.f32 0.0, %v1120
      %v1122 = vpop.f32.mrb[0].mxu0
      %1123 = vdwg.mxu0
      %1124 = vmatprep.subr.bf16.mxu0 0
      %1125 = vmatpush1.bf16.msra.mxu0 %v931
      %1126 = vmatprep.subr.bf16.mxu0 0
      %1127 = vmatpush1.bf16.msra.mxu0 %v932
      %1128 = vmatprep.subr.bf16.mxu0 0
      %1129 = vmatpush1.bf16.msra.mxu0 %v933
      %1130 = vmatprep.subr.bf16.mxu0 0
      %1131 = vmatpush1.bf16.msra.mxu0 %v934
      %1132 = vmatprep.subr.bf16.mxu0 0
      %1133 = vmatpush1.bf16.msra.mxu0 %v935
      %1134 = vmatprep.subr.bf16.mxu0 0
      %1135 = vmatpush1.bf16.msra.mxu0 %v936
      %1136 = vmatprep.subr.bf16.mxu0 0
      %1137 = vmatpush1.bf16.msra.mxu0 %v937
      %1138 = vmatprep.subr.bf16.mxu0 0
      %1139 = vmatpush1.bf16.msra.mxu0 %v938
      %1140 = vmatprep.subr.bf16.mxu0 0
      %1141 = vmatpush1.bf16.msra.mxu0 %v939
      %1142 = vmatprep.subr.bf16.mxu0 0
      %1143 = vmatpush1.bf16.msra.mxu0 %v940
      %1144 = vmatprep.subr.bf16.mxu0 0
      %1145 = vmatpush1.bf16.msra.mxu0 %v941
      %1146 = vmatprep.subr.bf16.mxu0 0
      %1147 = vmatpush1.bf16.msra.mxu0 %v942
      %1148 = vmatprep.subr.bf16.mxu0 0
      %1149 = vmatpush1.bf16.msra.mxu0 %v943
      %1150 = vmatprep.subr.bf16.mxu0 0
      %1151 = vmatpush1.bf16.msra.mxu0 %v944
      %1152 = vmatprep.subr.bf16.mxu0 0
      %1153 = vmatpush1.bf16.msra.mxu0 %v945
      %1154 = vmatprep.subr.bf16.mxu0 0
      %1155 = vmatpush1.bf16.msra.mxu0 %v946
      %1156 = vmatprep.mubr.bf16.mxu0 %v418
      %1157 = vmatmul.mubr.bf16.gmra.mrb[0].mxu0 %v406
      %v1158 = vpop.f32.mrb[0].mxu0
      %v1159 = vadd.f32 %v1094, %v1158
      %v1160 = vpop.f32.mrb[0].mxu0
      %v1161 = vpop.f32.mrb[0].mxu0
      %v1162 = vadd.f32 %v1097, %v1161
      %v1163 = vpop.f32.mrb[0].mxu0
      %1164 = vmatprep.mubr.bf16.mxu0 %v419
      %1165 = vmatmul.mubr.bf16.gmra.mrb[0].mxu0 %v407
      %v1166 = vpop.f32.mrb[0].mxu0
      %v1167 = vadd.f32 %v1102, %v1166
      %v1168 = vpop.f32.mrb[0].mxu0
      %v1169 = vpop.f32.mrb[0].mxu0
      %v1170 = vadd.f32 %v1105, %v1169
      %v1171 = vpop.f32.mrb[0].mxu0
      %1172 = vmatprep.mubr.bf16.mxu0 %v420
      %1173 = vmatmul.mubr.bf16.gmra.mrb[0].mxu0 %v408
      %v1174 = vpop.f32.mrb[0].mxu0
      %v1175 = vadd.f32 %v1110, %v1174
      %v1176 = vpop.f32.mrb[0].mxu0
      %v1177 = vpop.f32.mrb[0].mxu0
      %v1178 = vadd.f32 %v1113, %v1177
      %v1179 = vpop.f32.mrb[0].mxu0
      %1180 = vmatprep.mubr.bf16.mxu0 %v421
      %1181 = vmatmul.mubr.bf16.gmra.mrb[0].mxu0 %v409
      %v1182 = vpop.f32.mrb[0].mxu0
      %v1183 = vadd.f32 %v1118, %v1182
      %v1184 = vpop.f32.mrb[0].mxu0
      %v1185 = vpop.f32.mrb[0].mxu0
      %v1186 = vadd.f32 %v1121, %v1185
      %v1187 = vpop.f32.mrb[0].mxu0
      %1188 = vdwg.mxu0
      %1189 = vmatprep.subr.bf16.mxu0 0
      %1190 = vmatpush1.bf16.msra.mxu0 %v947
      %1191 = vmatprep.subr.bf16.mxu0 0
      %1192 = vmatpush1.bf16.msra.mxu0 %v948
      %1193 = vmatprep.subr.bf16.mxu0 0
      %1194 = vmatpush1.bf16.msra.mxu0 %v949
      %1195 = vmatprep.subr.bf16.mxu0 0
      %1196 = vmatpush1.bf16.msra.mxu0 %v950
      %1197 = vmatprep.subr.bf16.mxu0 0
      %1198 = vmatpush1.bf16.msra.mxu0 %v951
      %1199 = vmatprep.subr.bf16.mxu0 0
      %1200 = vmatpush1.bf16.msra.mxu0 %v952
      %1201 = vmatprep.subr.bf16.mxu0 0
      %1202 = vmatpush1.bf16.msra.mxu0 %v953
      %1203 = vmatprep.subr.bf16.mxu0 0
      %1204 = vmatpush1.bf16.msra.mxu0 %v954
      %1205 = vmatprep.subr.bf16.mxu0 0
      %1206 = vmatpush1.bf16.msra.mxu0 %v955
      %1207 = vmatprep.subr.bf16.mxu0 0
      %1208 = vmatpush1.bf16.msra.mxu0 %v956
      %1209 = vmatprep.subr.bf16.mxu0 0
      %1210 = vmatpush1.bf16.msra.mxu0 %v957
      %1211 = vmatprep.subr.bf16.mxu0 0
      %1212 = vmatpush1.bf16.msra.mxu0 %v958
      %1213 = vmatprep.subr.bf16.mxu0 0
      %1214 = vmatpush1.bf16.msra.mxu0 %v959
      %1215 = vmatprep.subr.bf16.mxu0 0
      %1216 = vmatpush1.bf16.msra.mxu0 %v960
      %1217 = vmatprep.subr.bf16.mxu0 0
      %1218 = vmatpush1.bf16.msra.mxu0 %v961
      %1219 = vmatprep.subr.bf16.mxu0 0
      %1220 = vmatpush1.bf16.msra.mxu0 %v962
      %1221 = vmatprep.mubr.bf16.mxu0 %v442
      %1222 = vmatmul.mubr.bf16.gmra.mrb[0].mxu0 %v430
      %v1223 = vpop.f32.mrb[0].mxu0
      %v1224 = vadd.f32 %v1159, %v1223
      %v1225 = vpop.f32.mrb[0].mxu0
      %v1226 = vpop.f32.mrb[0].mxu0
      %v1227 = vadd.f32 %v1162, %v1226
      %v1228 = vpop.f32.mrb[0].mxu0
      %1229 = vmatprep.mubr.bf16.mxu0 %v443
      %1230 = vmatmul.mubr.bf16.gmra.mrb[0].mxu0 %v431
      %v1231 = vpop.f32.mrb[0].mxu0
      %v1232 = vadd.f32 %v1167, %v1231
      %v1233 = vpop.f32.mrb[0].mxu0
      %v1234 = vpop.f32.mrb[0].mxu0
      %v1235 = vadd.f32 %v1170, %v1234
      %v1236 = vpop.f32.mrb[0].mxu0
      %1237 = vmatprep.mubr.bf16.mxu0 %v444
      %1238 = vmatmul.mubr.bf16.gmra.mrb[0].mxu0 %v432
      %v1239 = vpop.f32.mrb[0].mxu0
      %v1240 = vadd.f32 %v1175, %v1239
      %v1241 = vpop.f32.mrb[0].mxu0
      %v1242 = vpop.f32.mrb[0].mxu0
      %v1243 = vadd.f32 %v1178, %v1242
      %v1244 = vpop.f32.mrb[0].mxu0
      %1245 = vmatprep.mubr.bf16.mxu0 %v445
      %1246 = vmatmul.mubr.bf16.gmra.mrb[0].mxu0 %v433
      %v1247 = vpop.f32.mrb[0].mxu0
      %v1248 = vadd.f32 %v1183, %v1247
      %v1249 = vpop.f32.mrb[0].mxu0
      %v1250 = vpop.f32.mrb[0].mxu0
      %v1251 = vadd.f32 %v1186, %v1250
      %v1252 = vpop.f32.mrb[0].mxu0
      %1253 = vdwg.mxu0
      %1254 = vmatprep.subr.bf16.mxu0 0
      %1255 = vmatpush1.bf16.msra.mxu0 %v963
      %1256 = vmatprep.subr.bf16.mxu0 0
      %1257 = vmatpush1.bf16.msra.mxu0 %v964
      %1258 = vmatprep.subr.bf16.mxu0 0
      %1259 = vmatpush1.bf16.msra.mxu0 %v965
      %1260 = vmatprep.subr.bf16.mxu0 0
      %1261 = vmatpush1.bf16.msra.mxu0 %v966
      %1262 = vmatprep.subr.bf16.mxu0 0
      %1263 = vmatpush1.bf16.msra.mxu0 %v967
      %1264 = vmatprep.subr.bf16.mxu0 0
      %1265 = vmatpush1.bf16.msra.mxu0 %v968
      %1266 = vmatprep.subr.bf16.mxu0 0
      %1267 = vmatpush1.bf16.msra.mxu0 %v969
      %1268 = vmatprep.subr.bf16.mxu0 0
      %1269 = vmatpush1.bf16.msra.mxu0 %v970
      %1270 = vmatprep.subr.bf16.mxu0 0
      %1271 = vmatpush1.bf16.msra.mxu0 %v971
      %1272 = vmatprep.subr.bf16.mxu0 0
      %1273 = vmatpush1.bf16.msra.mxu0 %v972
      %1274 = vmatprep.subr.bf16.mxu0 0
      %1275 = vmatpush1.bf16.msra.mxu0 %v973
      %1276 = vmatprep.subr.bf16.mxu0 0
      %1277 = vmatpush1.bf16.msra.mxu0 %v974
      %1278 = vmatprep.subr.bf16.mxu0 0
      %1279 = vmatpush1.bf16.msra.mxu0 %v975
      %1280 = vmatprep.subr.bf16.mxu0 0
      %1281 = vmatpush1.bf16.msra.mxu0 %v976
      %1282 = vmatprep.subr.bf16.mxu0 0
      %1283 = vmatpush1.bf16.msra.mxu0 %v977
      %1284 = vmatprep.subr.bf16.mxu0 0
      %1285 = vmatpush1.bf16.msra.mxu0 %v978
      %1286 = vmatprep.mubr.bf16.mxu0 %v467
      %1287 = vmatmul.mubr.bf16.gmra.mrb[0].mxu0 %v455
      %v1288 = vpop.f32.mrb[0].mxu0
      %v1289 = vadd.f32 %v1224, %v1288
      %v1290 = vpop.f32.mrb[0].mxu0
      %v1291 = vpop.f32.mrb[0].mxu0
      %v1292 = vadd.f32 %v1227, %v1291
      %v1293 = vpop.f32.mrb[0].mxu0
      %1294 = vmatprep.mubr.bf16.mxu0 %v468
      %1295 = vmatmul.mubr.bf16.gmra.mrb[0].mxu0 %v456
      %v1296 = vpop.f32.mrb[0].mxu0
      %v1297 = vadd.f32 %v1232, %v1296
      %v1298 = vpop.f32.mrb[0].mxu0
      %v1299 = vpop.f32.mrb[0].mxu0
      %v1300 = vadd.f32 %v1235, %v1299
      %v1301 = vpop.f32.mrb[0].mxu0
      %1302 = vmatprep.mubr.bf16.mxu0 %v469
      %1303 = vmatmul.mubr.bf16.gmra.mrb[0].mxu0 %v457
      %v1304 = vpop.f32.mrb[0].mxu0
      %v1305 = vadd.f32 %v1240, %v1304
      %v1306 = vpop.f32.mrb[0].mxu0
      %v1307 = vpop.f32.mrb[0].mxu0
      %v1308 = vadd.f32 %v1243, %v1307
      %v1309 = vpop.f32.mrb[0].mxu0
      %1310 = vmatprep.mubr.bf16.mxu0 %v470
      %1311 = vmatmul.mubr.bf16.gmra.mrb[0].mxu0 %v458
      %v1312 = vpop.f32.mrb[0].mxu0
      %v1313 = vadd.f32 %v1248, %v1312
      %v1314 = vpop.f32.mrb[0].mxu0
      %v1315 = vpop.f32.mrb[0].mxu0
      %v1316 = vadd.f32 %v1251, %v1315
      %v1317 = vpop.f32.mrb[0].mxu0
      %1318 = vdwg.mxu0
      %1319 = vmatprep.subr.bf16.mxu0 0
      %1320 = vmatpush1.bf16.msra.mxu0 %v979
      %1321 = vmatprep.subr.bf16.mxu0 0
      %1322 = vmatpush1.bf16.msra.mxu0 %v980
      %1323 = vmatprep.subr.bf16.mxu0 0
      %1324 = vmatpush1.bf16.msra.mxu0 %v981
      %1325 = vmatprep.subr.bf16.mxu0 0
      %1326 = vmatpush1.bf16.msra.mxu0 %v982
      %1327 = vmatprep.subr.bf16.mxu0 0
      %1328 = vmatpush1.bf16.msra.mxu0 %v983
      %1329 = vmatprep.subr.bf16.mxu0 0
      %1330 = vmatpush1.bf16.msra.mxu0 %v984
      %1331 = vmatprep.subr.bf16.mxu0 0
      %1332 = vmatpush1.bf16.msra.mxu0 %v985
      %1333 = vmatprep.subr.bf16.mxu0 0
      %1334 = vmatpush1.bf16.msra.mxu0 %v986
      %1335 = vmatprep.subr.bf16.mxu0 0
      %1336 = vmatpush1.bf16.msra.mxu0 0
      %1337 = vmatprep.subr.bf16.mxu0 0
      %1338 = vmatpush1.bf16.msra.mxu0 0
      %1339 = vmatprep.subr.bf16.mxu0 0
      %1340 = vmatpush1.bf16.msra.mxu0 0
      %1341 = vmatprep.subr.bf16.mxu0 0
      %1342 = vmatpush1.bf16.msra.mxu0 0
      %1343 = vmatprep.subr.bf16.mxu0 0
      %1344 = vmatpush1.bf16.msra.mxu0 0
      %1345 = vmatprep.subr.bf16.mxu0 0
      %1346 = vmatpush1.bf16.msra.mxu0 0
      %1347 = vmatprep.subr.bf16.mxu0 0
      %1348 = vmatpush1.bf16.msra.mxu0 0
      %1349 = vmatprep.subr.bf16.mxu0 0
      %1350 = vmatpush1.bf16.msra.mxu0 0
      %1351 = vmatprep.mubr.bf16.mxu0 0
      %1352 = vmatmul.mubr.bf16.gmra.mrb[0].mxu0 %v479
      %v1353 = vpop.f32.mrb[0].mxu0
      %v1354 = vadd.f32 %v1289, %v1353
      %v1355 = vpop.f32.mrb[0].mxu0
      %v1356 = vpop.f32.mrb[0].mxu0
      %v1357 = vadd.f32 %v1292, %v1356
      %v1358 = vpop.f32.mrb[0].mxu0
      %1359 = vmatprep.mubr.bf16.mxu0 0
      %1360 = vmatmul.mubr.bf16.gmra.mrb[0].mxu0 %v480
      %v1361 = vpop.f32.mrb[0].mxu0
      %v1362 = vadd.f32 %v1297, %v1361
      %v1363 = vpop.f32.mrb[0].mxu0
      %v1364 = vpop.f32.mrb[0].mxu0
      %v1365 = vadd.f32 %v1300, %v1364
      %v1366 = vpop.f32.mrb[0].mxu0
      %1367 = vmatprep.mubr.bf16.mxu0 0
      %1368 = vmatmul.mubr.bf16.gmra.mrb[0].mxu0 %v481
      %v1369 = vpop.f32.mrb[0].mxu0
      %v1370 = vadd.f32 %v1305, %v1369
      %v1371 = vpop.f32.mrb[0].mxu0
      %v1372 = vpop.f32.mrb[0].mxu0
      %v1373 = vadd.f32 %v1308, %v1372
      %v1374 = vpop.f32.mrb[0].mxu0
      %1375 = vmatprep.mubr.bf16.mxu0 0
      %1376 = vmatmul.mubr.bf16.gmra.mrb[0].mxu0 %v482
      %v1377 = vpop.f32.mrb[0].mxu0
      %v1378 = vadd.f32 %v1313, %v1377
      %v1379 = vpop.f32.mrb[0].mxu0
      %v1380 = vpop.f32.mrb[0].mxu0
      %v1381 = vadd.f32 %v1316, %v1380
      %v1382 = vpop.f32.mrb[0].mxu0
      %1383 = vdwg.mxu0
      %v1384 = vld [vmem:[%s2] sm:$0x1]
      %v1386 = vlaneseq
      %v1387 = vshrl.u32 %v1386, 7
      %v1388 = vsub.s32 0, %v1387
      %v1389 = vrot.slane %v1384, %v1388
      %v1391 = vmul.f32 %v1354, %v1389
      %v1392 = vmul.f32 %v1357, %v1389
      %v1393 = vmul.f32 %v1362, %v1389
      %v1394 = vmul.f32 %v1365, %v1389
      %v1395 = vmul.f32 %v1370, %v1389
      %v1396 = vmul.f32 %v1373, %v1389
      %v1397 = vmul.f32 %v1378, %v1389
      %v1398 = vmul.f32 %v1381, %v1389
      %v1399 = vld [vmem:[%s3] sm:$0x1]
      %v1401 = vlaneseq
      %v1402 = vshrl.u32 %v1401, 7
      %v1403 = vsub.s32 0, %v1402
      %v1404 = vrot.slane %v1399, %v1403
      %v1406 = vadd.f32 %v1391, %v1404
      %v1407 = vadd.f32 %v1392, %v1404
      %v1408 = vadd.f32 %v1393, %v1404
      %v1409 = vadd.f32 %v1394, %v1404
      %v1410 = vadd.f32 %v1395, %v1404
      %v1411 = vadd.f32 %v1396, %v1404
      %v1412 = vadd.f32 %v1397, %v1404
      %v1413 = vadd.f32 %v1398, %v1404
      %v1414 = vmax.f32 %v1406, 0.0
      %v1415 = vmax.f32 %v1407, 0.0
      %v1416 = vmax.f32 %v1408, 0.0
      %v1417 = vmax.f32 %v1409, 0.0
      %v1418 = vmax.f32 %v1410, 0.0
      %v1419 = vmax.f32 %v1411, 0.0
      %v1420 = vmax.f32 %v1412, 0.0
      %v1421 = vmax.f32 %v1413, 0.0
      %1422 = vst [vmem:[%s364 + $0x1] sm:$0xff] %v1414
      %1423 = vst [vmem:[%s364 + $0x11] sm:$0xff] %v1415
      %1424 = vst [vmem:[%s364 + $0x21] sm:$0xff] %v1416
      %1425 = vst [vmem:[%s364 + $0x31] sm:$0xff] %v1417
      %1426 = vst [vmem:[%s364 + $0x41] sm:$0xff] %v1418
      %1427 = vst [vmem:[%s364 + $0x51] sm:$0xff] %v1419
      %1428 = vst [vmem:[%s364 + $0x61] sm:$0xff] %v1420
      %1429 = vst [vmem:[%s364 + $0x71] sm:$0xff] %v1421
      %v1430 = vld [vmem:[#allocation2] sm:$0xff]
      %v1431 = vld [vmem:[#allocation2 + $0x10] sm:$0xff]
      %v1432 = vld [vmem:[#allocation2 + $0x20] sm:$0xff]
      %v1433 = vld [vmem:[#allocation2 + $0x30] sm:$0xff]
      %v1434 = vld [vmem:[#allocation2 + $0x40] sm:$0xff]
      %v1435 = vld [vmem:[#allocation2 + $0x50] sm:$0xff]
      %v1436 = vld [vmem:[#allocation2 + $0x60] sm:$0xff]
      %v1437 = vld [vmem:[#allocation2 + $0x70] sm:$0xff]
      %v1438 = vpack.c.bf16 %v1431, %v1430
      %v1439 = vpack.c.bf16 %v1433, %v1432
      %v1440 = vpack.c.bf16 %v1435, %v1434
      %v1441 = vpack.c.bf16 %v1437, %v1436
      %v1442 = vld [vmem:[#allocation2 + $0x1] sm:$0xff]
      %v1443 = vld [vmem:[#allocation2 + $0x11] sm:$0xff]
      %v1444 = vld [vmem:[#allocation2 + $0x21] sm:$0xff]
      %v1445 = vld [vmem:[#allocation2 + $0x31] sm:$0xff]
      %v1446 = vld [vmem:[#allocation2 + $0x41] sm:$0xff]
      %v1447 = vld [vmem:[#allocation2 + $0x51] sm:$0xff]
      %v1448 = vld [vmem:[#allocation2 + $0x61] sm:$0xff]
      %v1449 = vld [vmem:[#allocation2 + $0x71] sm:$0xff]
      %v1450 = vpack.c.bf16 %v1443, %v1442
      %v1451 = vpack.c.bf16 %v1445, %v1444
      %v1452 = vpack.c.bf16 %v1447, %v1446
      %v1453 = vpack.c.bf16 %v1449, %v1448
      %v1454 = vld [vmem:[#allocation2 + $0x2] sm:$0xff]
      %v1455 = vld [vmem:[#allocation2 + $0x12] sm:$0xff]
      %v1456 = vld [vmem:[#allocation2 + $0x22] sm:$0xff]
      %v1457 = vld [vmem:[#allocation2 + $0x32] sm:$0xff]
      %v1458 = vld [vmem:[#allocation2 + $0x42] sm:$0xff]
      %v1459 = vld [vmem:[#allocation2 + $0x52] sm:$0xff]
      %v1460 = vld [vmem:[#allocation2 + $0x62] sm:$0xff]
      %v1461 = vld [vmem:[#allocation2 + $0x72] sm:$0xff]
      %v1462 = vpack.c.bf16 %v1455, %v1454
      %v1463 = vpack.c.bf16 %v1457, %v1456
      %v1464 = vpack.c.bf16 %v1459, %v1458
      %v1465 = vpack.c.bf16 %v1461, %v1460
      %v1466 = vld [vmem:[%s364] sm:$0xff]
      %v1467 = vld [vmem:[%s364 + $0x10] sm:$0xff]
      %v1468 = vld [vmem:[%s364 + $0x20] sm:$0xff]
      %v1469 = vld [vmem:[%s364 + $0x30] sm:$0xff]
      %v1470 = vld [vmem:[%s364 + $0x40] sm:$0xff]
      %v1471 = vld [vmem:[%s364 + $0x50] sm:$0xff]
      %v1472 = vld [vmem:[%s364 + $0x60] sm:$0xff]
      %v1473 = vld [vmem:[%s364 + $0x70] sm:$0xff]
      %v1474 = vpack.c.bf16 %v1467, %v1466
      %v1475 = vpack.c.bf16 %v1469, %v1468
      %v1476 = vpack.c.bf16 %v1471, %v1470
      %v1477 = vpack.c.bf16 %v1473, %v1472
      %v1478 = vld [vmem:[%s364 + $0x1] sm:$0xff]
      %v1479 = vld [vmem:[%s364 + $0x11] sm:$0xff]
      %v1480 = vld [vmem:[%s364 + $0x21] sm:$0xff]
      %v1481 = vld [vmem:[%s364 + $0x31] sm:$0xff]
      %v1482 = vld [vmem:[%s364 + $0x41] sm:$0xff]
      %v1483 = vld [vmem:[%s364 + $0x51] sm:$0xff]
      %v1484 = vld [vmem:[%s364 + $0x61] sm:$0xff]
      %v1485 = vld [vmem:[%s364 + $0x71] sm:$0xff]
      %v1486 = vpack.c.bf16 %v1479, %v1478
      %v1487 = vpack.c.bf16 %v1481, %v1480
      %v1488 = vpack.c.bf16 %v1483, %v1482
      %v1489 = vpack.c.bf16 %v1485, %v1484
      %v1490 = vld [vmem:[%s364 + $0x2] sm:$0xff]
      %v1491 = vld [vmem:[%s364 + $0x12] sm:$0xff]
      %v1492 = vld [vmem:[%s364 + $0x22] sm:$0xff]
      %v1493 = vld [vmem:[%s364 + $0x32] sm:$0xff]
      %v1494 = vld [vmem:[%s364 + $0x42] sm:$0xff]
      %v1495 = vld [vmem:[%s364 + $0x52] sm:$0xff]
      %v1496 = vld [vmem:[%s364 + $0x62] sm:$0xff]
      %v1497 = vld [vmem:[%s364 + $0x72] sm:$0xff]
      %v1498 = vpack.c.bf16 %v1491, %v1490
      %v1499 = vpack.c.bf16 %v1493, %v1492
      %v1500 = vpack.c.bf16 %v1495, %v1494
      %v1501 = vpack.c.bf16 %v1497, %v1496
      %v1502 = vld [vmem:[%s446] sm:$0xff]
      %v1503 = vld [vmem:[%s446 + $0x10] sm:$0xff]
      %v1504 = vld [vmem:[%s446 + $0x20] sm:$0xff]
      %v1505 = vld [vmem:[%s446 + $0x30] sm:$0xff]
      %v1506 = vld [vmem:[%s446 + $0x40] sm:$0xff]
      %v1507 = vld [vmem:[%s446 + $0x50] sm:$0xff]
      %v1508 = vld [vmem:[%s446 + $0x60] sm:$0xff]
      %v1509 = vld [vmem:[%s446 + $0x70] sm:$0xff]
      %v1510 = vpack.c.bf16 %v1503, %v1502
      %v1511 = vpack.c.bf16 %v1505, %v1504
      %v1512 = vpack.c.bf16 %v1507, %v1506
      %v1513 = vpack.c.bf16 %v1509, %v1508
      %v1514 = vld [vmem:[%s446 + $0x1] sm:$0xff]
      %v1515 = vld [vmem:[%s446 + $0x11] sm:$0xff]
      %v1516 = vld [vmem:[%s446 + $0x21] sm:$0xff]
      %v1517 = vld [vmem:[%s446 + $0x31] sm:$0xff]
      %v1518 = vld [vmem:[%s446 + $0x41] sm:$0xff]
      %v1519 = vld [vmem:[%s446 + $0x51] sm:$0xff]
      %v1520 = vld [vmem:[%s446 + $0x61] sm:$0xff]
      %v1521 = vld [vmem:[%s446 + $0x71] sm:$0xff]
      %v1522 = vpack.c.bf16 %v1515, %v1514
      %v1523 = vpack.c.bf16 %v1517, %v1516
      %v1524 = vpack.c.bf16 %v1519, %v1518
      %v1525 = vpack.c.bf16 %v1521, %v1520
      %v1526 = vld [vmem:[%s446 + $0x2] sm:$0xff]
      %v1527 = vld [vmem:[%s446 + $0x12] sm:$0xff]
      %v1528 = vld [vmem:[%s446 + $0x22] sm:$0xff]
      %v1529 = vld [vmem:[%s446 + $0x32] sm:$0xff]
      %v1530 = vld [vmem:[%s446 + $0x42] sm:$0xff]
      %v1531 = vld [vmem:[%s446 + $0x52] sm:$0xff]
      %v1532 = vld [vmem:[%s446 + $0x62] sm:$0xff]
      %v1533 = vld [vmem:[%s446 + $0x72] sm:$0xff]
      %v1534 = vpack.c.bf16 %v1527, %v1526
      %v1535 = vpack.c.bf16 %v1529, %v1528
      %v1536 = vpack.c.bf16 %v1531, %v1530
      %v1537 = vpack.c.bf16 %v1533, %v1532
      %v1538 = vld [vmem:[%s4] sm:$0xf]
      %v1539 = vld [vmem:[%s4 + $0x4] sm:$0xf]
      %v1540 = vld [vmem:[%s4 + $0x8] sm:$0xf]
      %v1541 = vld [vmem:[%s4 + $0xc] sm:$0xf]
      %v1542 = vld [vmem:[%s4 + $0x10] sm:$0xf]
      %v1543 = vld [vmem:[%s4 + $0x14] sm:$0xf]
      %v1544 = vld [vmem:[%s4 + $0x18] sm:$0xf]
      %v1545 = vld [vmem:[%s4 + $0x1c] sm:$0xf]
      %v1546 = vld [vmem:[%s4 + $0x20] sm:$0xf]
      %v1547 = vld [vmem:[%s4 + $0x24] sm:$0xf]
      %v1548 = vld [vmem:[%s4 + $0x28] sm:$0xf]
      %v1549 = vld [vmem:[%s4 + $0x2c] sm:$0xf]
      %v1550 = vld [vmem:[%s4 + $0x30] sm:$0xf]
      %v1551 = vld [vmem:[%s4 + $0x34] sm:$0xf]
      %v1552 = vld [vmem:[%s4 + $0x38] sm:$0xf]
      %v1553 = vld [vmem:[%s4 + $0x3c] sm:$0xf]
      %v1554 = vld [vmem:[%s4 + $0x40] sm:$0xf]
      %v1555 = vld [vmem:[%s4 + $0x44] sm:$0xf]
      %v1556 = vld [vmem:[%s4 + $0x48] sm:$0xf]
      %v1557 = vld [vmem:[%s4 + $0x4c] sm:$0xf]
      %v1558 = vld [vmem:[%s4 + $0x50] sm:$0xf]
      %v1559 = vld [vmem:[%s4 + $0x54] sm:$0xf]
      %v1560 = vld [vmem:[%s4 + $0x58] sm:$0xf]
      %v1561 = vld [vmem:[%s4 + $0x5c] sm:$0xf]
      %v1562 = vld [vmem:[%s4 + $0x60] sm:$0xf]
      %v1563 = vld [vmem:[%s4 + $0x64] sm:$0xf]
      %v1564 = vld [vmem:[%s4 + $0x68] sm:$0xf]
      %v1565 = vld [vmem:[%s4 + $0x6c] sm:$0xf]
      %v1566 = vld [vmem:[%s4 + $0x70] sm:$0xf]
      %v1567 = vld [vmem:[%s4 + $0x74] sm:$0xf]
      %v1568 = vld [vmem:[%s4 + $0x78] sm:$0xf]
      %v1569 = vld [vmem:[%s4 + $0x7c] sm:$0xf]
      %v1570 = vld [vmem:[%s4 + $0x80] sm:$0xf]
      %v1571 = vld [vmem:[%s4 + $0x84] sm:$0xf]
      %v1572 = vld [vmem:[%s4 + $0x88] sm:$0xf]
      %v1573 = vld [vmem:[%s4 + $0x8c] sm:$0xf]
      %v1574 = vld [vmem:[%s4 + $0x90] sm:$0xf]
      %v1575 = vld [vmem:[%s4 + $0x94] sm:$0xf]
      %v1576 = vld [vmem:[%s4 + $0x98] sm:$0xf]
      %v1577 = vld [vmem:[%s4 + $0x9c] sm:$0xf]
      %v1578 = vld [vmem:[%s4 + $0xa0] sm:$0xf]
      %v1579 = vld [vmem:[%s4 + $0xa4] sm:$0xf]
      %v1580 = vld [vmem:[%s4 + $0xa8] sm:$0xf]
      %v1581 = vld [vmem:[%s4 + $0xac] sm:$0xf]
      %v1582 = vld [vmem:[%s4 + $0xb0] sm:$0xf]
      %v1583 = vld [vmem:[%s4 + $0xb4] sm:$0xf]
      %v1584 = vld [vmem:[%s4 + $0xb8] sm:$0xf]
      %v1585 = vld [vmem:[%s4 + $0xbc] sm:$0xf]
      %v1586 = vld [vmem:[%s4 + $0xc0] sm:$0xf]
      %v1587 = vld [vmem:[%s4 + $0xc4] sm:$0xf]
      %v1588 = vld [vmem:[%s4 + $0xc8] sm:$0xf]
      %v1589 = vld [vmem:[%s4 + $0xcc] sm:$0xf]
      %v1590 = vld [vmem:[%s4 + $0xd0] sm:$0xf]
      %v1591 = vld [vmem:[%s4 + $0xd4] sm:$0xf]
      %v1592 = vld [vmem:[%s4 + $0xd8] sm:$0xf]
      %v1593 = vld [vmem:[%s4 + $0xdc] sm:$0xf]
      %v1594 = vld [vmem:[%s4 + $0xe0] sm:$0xf]
      %v1595 = vld [vmem:[%s4 + $0xe4] sm:$0xf]
      %v1596 = vld [vmem:[%s4 + $0xe8] sm:$0xf]
      %v1597 = vld [vmem:[%s4 + $0xec] sm:$0xf]
      %v1598 = vld [vmem:[%s4 + $0xf0] sm:$0xf]
      %v1599 = vld [vmem:[%s4 + $0xf4] sm:$0xf]
      %v1600 = vld [vmem:[%s4 + $0xf8] sm:$0xf]
      %v1601 = vld [vmem:[%s4 + $0xfc] sm:$0xf]
      %v1602 = vld [vmem:[%s4 + $0x100] sm:$0xf]
      %v1603 = vld [vmem:[%s4 + $0x104] sm:$0xf]
      %v1604 = vld [vmem:[%s4 + $0x108] sm:$0xf]
      %v1605 = vld [vmem:[%s4 + $0x10c] sm:$0xf]
      %v1606 = vld [vmem:[%s4 + $0x110] sm:$0xf]
      %v1607 = vld [vmem:[%s4 + $0x114] sm:$0xf]
      %v1608 = vld [vmem:[%s4 + $0x118] sm:$0xf]
      %v1609 = vld [vmem:[%s4 + $0x11c] sm:$0xf]
      %v1610 = vld [vmem:[%s4 + $0x120] sm:$0xf]
      %v1611 = vld [vmem:[%s4 + $0x124] sm:$0xf]
      %v1612 = vld [vmem:[%s4 + $0x128] sm:$0xf]
      %v1613 = vld [vmem:[%s4 + $0x12c] sm:$0xf]
      %v1614 = vld [vmem:[%s4 + $0x130] sm:$0xf]
      %v1615 = vld [vmem:[%s4 + $0x134] sm:$0xf]
      %v1616 = vld [vmem:[%s4 + $0x138] sm:$0xf]
      %v1617 = vld [vmem:[%s4 + $0x13c] sm:$0xf]
      %v1618 = vld [vmem:[%s4 + $0x140] sm:$0xf]
      %v1619 = vld [vmem:[%s4 + $0x144] sm:$0xf]
      %v1620 = vld [vmem:[%s4 + $0x148] sm:$0xf]
      %v1621 = vld [vmem:[%s4 + $0x14c] sm:$0xf]
      %v1622 = vld [vmem:[%s4 + $0x150] sm:$0xf]
      %v1623 = vld [vmem:[%s4 + $0x154] sm:$0xf]
      %v1624 = vld [vmem:[%s4 + $0x158] sm:$0xf]
      %v1625 = vld [vmem:[%s4 + $0x15c] sm:$0xf]
      %v1626 = vld [vmem:[%s4 + $0x160] sm:$0xf]
      %v1627 = vld [vmem:[%s4 + $0x164] sm:$0xf]
      %v1628 = vld [vmem:[%s4 + $0x168] sm:$0xf]
      %v1629 = vld [vmem:[%s4 + $0x16c] sm:$0xf]
      %v1630 = vld [vmem:[%s4 + $0x170] sm:$0xf]
      %v1631 = vld [vmem:[%s4 + $0x174] sm:$0xf]
      %v1632 = vld [vmem:[%s4 + $0x178] sm:$0xf]
      %v1633 = vld [vmem:[%s4 + $0x17c] sm:$0xf]
      %v1634 = vld [vmem:[%s4 + $0x180] sm:$0xf]
      %v1635 = vld [vmem:[%s4 + $0x184] sm:$0xf]
      %v1636 = vld [vmem:[%s4 + $0x188] sm:$0xf]
      %v1637 = vld [vmem:[%s4 + $0x18c] sm:$0xf]
      %v1638 = vld [vmem:[%s4 + $0x190] sm:$0xf]
      %v1639 = vld [vmem:[%s4 + $0x194] sm:$0xf]
      %v1640 = vld [vmem:[%s4 + $0x198] sm:$0xf]
      %v1641 = vld [vmem:[%s4 + $0x19c] sm:$0xf]
      %v1642 = vld [vmem:[%s4 + $0x1a0] sm:$0xf]
      %v1643 = vld [vmem:[%s4 + $0x1a4] sm:$0xf]
      %v1644 = vld [vmem:[%s4 + $0x1a8] sm:$0xf]
      %v1645 = vld [vmem:[%s4 + $0x1ac] sm:$0xf]
      %v1646 = vld [vmem:[%s4 + $0x1b0] sm:$0xf]
      %v1647 = vld [vmem:[%s4 + $0x1b4] sm:$0xf]
      %v1648 = vld [vmem:[%s4 + $0x1b8] sm:$0xf]
      %v1649 = vld [vmem:[%s4 + $0x1bc] sm:$0xf]
      %v1650 = vld [vmem:[%s4 + $0x1c0] sm:$0xf]
      %v1651 = vld [vmem:[%s4 + $0x1c4] sm:$0xf]
      %v1652 = vld [vmem:[%s4 + $0x1c8] sm:$0xf]
      %v1653 = vld [vmem:[%s4 + $0x1cc] sm:$0xf]
      %v1654 = vld [vmem:[%s4 + $0x1d0] sm:$0xf]
      %v1655 = vld [vmem:[%s4 + $0x1d4] sm:$0xf]
      %v1656 = vld [vmem:[%s4 + $0x1d8] sm:$0xf]
      %v1657 = vld [vmem:[%s4 + $0x1dc] sm:$0xf]
      %v1658 = vld [vmem:[%s4 + $0x1e0] sm:$0xf]
      %v1659 = vld [vmem:[%s4 + $0x1e4] sm:$0xf]
      %v1660 = vld [vmem:[%s4 + $0x1e8] sm:$0xf]
      %v1661 = vld [vmem:[%s4 + $0x1ec] sm:$0xf]
      %v1662 = vld [vmem:[%s4 + $0x1f0] sm:$0xf]
      %v1663 = vld [vmem:[%s4 + $0x1f4] sm:$0xf]
      %v1664 = vld [vmem:[%s4 + $0x1f8] sm:$0xf]
      %v1665 = vld [vmem:[%s4 + $0x1fc] sm:$0xf]
      %v1666 = vld [vmem:[%s4 + $0x200] sm:$0xf]
      %v1667 = vld [vmem:[%s4 + $0x204] sm:$0xf]
      %v1668 = vld [vmem:[%s4 + $0x208] sm:$0xf]
      %v1669 = vld [vmem:[%s4 + $0x20c] sm:$0xf]
      %v1670 = vld [vmem:[%s4 + $0x210] sm:$0xf]
      %v1671 = vld [vmem:[%s4 + $0x214] sm:$0xf]
      %v1672 = vld [vmem:[%s4 + $0x218] sm:$0xf]
      %v1673 = vld [vmem:[%s4 + $0x21c] sm:$0xf]
      %v1674 = vld [vmem:[%s4 + $0x220] sm:$0xf]
      %v1675 = vld [vmem:[%s4 + $0x224] sm:$0xf]
      %v1676 = vld [vmem:[%s4 + $0x228] sm:$0xf]
      %v1677 = vld [vmem:[%s4 + $0x22c] sm:$0xf]
      %v1678 = vld [vmem:[%s4 + $0x230] sm:$0xf]
      %v1679 = vld [vmem:[%s4 + $0x234] sm:$0xf]
      %v1680 = vld [vmem:[%s4 + $0x238] sm:$0xf]
      %v1681 = vld [vmem:[%s4 + $0x23c] sm:$0xf]
      %v1826 = vunpack.c.l.b16 %v1538
      %v1827 = vunpack.c.l.b16 %v1539
      %v1828 = vunpack.c.l.b16 %v1540
      %v1829 = vunpack.c.l.b16 %v1541
      %v1830 = vunpack.c.l.b16 %v1542
      %v1831 = vunpack.c.l.b16 %v1543
      %v1832 = vunpack.c.l.b16 %v1544
      %v1833 = vunpack.c.l.b16 %v1545
      %v1834 = vunpack.c.l.b16 %v1546
      %v1835 = vunpack.c.l.b16 %v1547
      %v1836 = vunpack.c.l.b16 %v1548
      %v1837 = vunpack.c.l.b16 %v1549
      %v1838 = vunpack.c.l.b16 %v1550
      %v1839 = vunpack.c.l.b16 %v1551
      %v1840 = vunpack.c.l.b16 %v1552
      %v1841 = vunpack.c.l.b16 %v1553
      %v1842 = vunpack.c.l.b16 %v1554
      %v1843 = vunpack.c.l.b16 %v1555
      %v1844 = vunpack.c.l.b16 %v1556
      %v1845 = vunpack.c.l.b16 %v1557
      %v1846 = vunpack.c.l.b16 %v1558
      %v1847 = vunpack.c.l.b16 %v1559
      %v1848 = vunpack.c.l.b16 %v1560
      %v1849 = vunpack.c.l.b16 %v1561
      %v1850 = vunpack.c.l.b16 %v1562
      %v1851 = vunpack.c.l.b16 %v1563
      %v1852 = vunpack.c.l.b16 %v1564
      %v1853 = vunpack.c.l.b16 %v1565
      %v1854 = vunpack.c.l.b16 %v1566
      %v1855 = vunpack.c.l.b16 %v1567
      %v1856 = vunpack.c.l.b16 %v1568
      %v1857 = vunpack.c.l.b16 %v1569
      %v1858 = vunpack.c.l.b16 %v1570
      %v1859 = vunpack.c.l.b16 %v1571
      %v1860 = vunpack.c.l.b16 %v1572
      %v1861 = vunpack.c.l.b16 %v1573
      %v1862 = vunpack.c.l.b16 %v1574
      %v1863 = vunpack.c.l.b16 %v1575
      %v1864 = vunpack.c.l.b16 %v1576
      %v1865 = vunpack.c.l.b16 %v1577
      %v1866 = vunpack.c.l.b16 %v1578
      %v1867 = vunpack.c.l.b16 %v1579
      %v1868 = vunpack.c.l.b16 %v1580
      %v1869 = vunpack.c.l.b16 %v1581
      %v1870 = vunpack.c.l.b16 %v1582
      %v1871 = vunpack.c.l.b16 %v1583
      %v1872 = vunpack.c.l.b16 %v1584
      %v1873 = vunpack.c.l.b16 %v1585
      %v1874 = vunpack.c.l.b16 %v1586
      %v1875 = vunpack.c.l.b16 %v1587
      %v1876 = vunpack.c.l.b16 %v1588
      %v1877 = vunpack.c.l.b16 %v1589
      %v1878 = vunpack.c.l.b16 %v1590
      %v1879 = vunpack.c.l.b16 %v1591
      %v1880 = vunpack.c.l.b16 %v1592
      %v1881 = vunpack.c.l.b16 %v1593
      %v1882 = vunpack.c.l.b16 %v1594
      %v1883 = vunpack.c.l.b16 %v1595
      %v1884 = vunpack.c.l.b16 %v1596
      %v1885 = vunpack.c.l.b16 %v1597
      %v1886 = vunpack.c.l.b16 %v1598
      %v1887 = vunpack.c.l.b16 %v1599
      %v1888 = vunpack.c.l.b16 %v1600
      %v1889 = vunpack.c.l.b16 %v1601
      %v1890 = vunpack.c.l.b16 %v1602
      %v1891 = vunpack.c.l.b16 %v1603
      %v1892 = vunpack.c.l.b16 %v1604
      %v1893 = vunpack.c.l.b16 %v1605
      %v1894 = vunpack.c.l.b16 %v1606
      %v1895 = vunpack.c.l.b16 %v1607
      %v1896 = vunpack.c.l.b16 %v1608
      %v1897 = vunpack.c.l.b16 %v1609
      %v1898 = vunpack.c.l.b16 %v1610
      %v1899 = vunpack.c.l.b16 %v1611
      %v1900 = vunpack.c.l.b16 %v1612
      %v1901 = vunpack.c.l.b16 %v1613
      %v1902 = vunpack.c.l.b16 %v1614
      %v1903 = vunpack.c.l.b16 %v1615
      %v1904 = vunpack.c.l.b16 %v1616
      %v1905 = vunpack.c.l.b16 %v1617
      %v1906 = vunpack.c.l.b16 %v1618
      %v1907 = vunpack.c.l.b16 %v1619
      %v1908 = vunpack.c.l.b16 %v1620
      %v1909 = vunpack.c.l.b16 %v1621
      %v1910 = vunpack.c.l.b16 %v1622
      %v1911 = vunpack.c.l.b16 %v1623
      %v1912 = vunpack.c.l.b16 %v1624
      %v1913 = vunpack.c.l.b16 %v1625
      %v1914 = vunpack.c.l.b16 %v1626
      %v1915 = vunpack.c.l.b16 %v1627
      %v1916 = vunpack.c.l.b16 %v1628
      %v1917 = vunpack.c.l.b16 %v1629
      %v1918 = vunpack.c.l.b16 %v1630
      %v1919 = vunpack.c.l.b16 %v1631
      %v1920 = vunpack.c.l.b16 %v1632
      %v1921 = vunpack.c.l.b16 %v1633
      %v1922 = vunpack.c.l.b16 %v1634
      %v1923 = vunpack.c.l.b16 %v1635
      %v1924 = vunpack.c.l.b16 %v1636
      %v1925 = vunpack.c.l.b16 %v1637
      %v1926 = vunpack.c.l.b16 %v1638
      %v1927 = vunpack.c.l.b16 %v1639
      %v1928 = vunpack.c.l.b16 %v1640
      %v1929 = vunpack.c.l.b16 %v1641
      %v1930 = vunpack.c.l.b16 %v1642
      %v1931 = vunpack.c.l.b16 %v1643
      %v1932 = vunpack.c.l.b16 %v1644
      %v1933 = vunpack.c.l.b16 %v1645
      %v1934 = vunpack.c.l.b16 %v1646
      %v1935 = vunpack.c.l.b16 %v1647
      %v1936 = vunpack.c.l.b16 %v1648
      %v1937 = vunpack.c.l.b16 %v1649
      %v1938 = vunpack.c.l.b16 %v1650
      %v1939 = vunpack.c.l.b16 %v1651
      %v1940 = vunpack.c.l.b16 %v1652
      %v1941 = vunpack.c.l.b16 %v1653
      %v1942 = vunpack.c.l.b16 %v1654
      %v1943 = vunpack.c.l.b16 %v1655
      %v1944 = vunpack.c.l.b16 %v1656
      %v1945 = vunpack.c.l.b16 %v1657
      %v1946 = vunpack.c.l.b16 %v1658
      %v1947 = vunpack.c.l.b16 %v1659
      %v1948 = vunpack.c.l.b16 %v1660
      %v1949 = vunpack.c.l.b16 %v1661
      %v1950 = vunpack.c.l.b16 %v1662
      %v1951 = vunpack.c.l.b16 %v1663
      %v1952 = vunpack.c.l.b16 %v1664
      %v1953 = vunpack.c.l.b16 %v1665
      %v1954 = vunpack.c.l.b16 %v1666
      %v1955 = vunpack.c.l.b16 %v1667
      %v1956 = vunpack.c.l.b16 %v1668
      %v1957 = vunpack.c.l.b16 %v1669
      %v1958 = vunpack.c.l.b16 %v1670
      %v1959 = vunpack.c.l.b16 %v1671
      %v1960 = vunpack.c.l.b16 %v1672
      %v1961 = vunpack.c.l.b16 %v1673
      %v1962 = vunpack.c.l.b16 %v1674
      %v1963 = vunpack.c.l.b16 %v1675
      %v1964 = vunpack.c.l.b16 %v1676
      %v1965 = vunpack.c.l.b16 %v1677
      %v1966 = vunpack.c.l.b16 %v1678
      %v1967 = vunpack.c.l.b16 %v1679
      %v1968 = vunpack.c.l.b16 %v1680
      %v1969 = vunpack.c.l.b16 %v1681
      %v1970 = vpack.c.b16 %v1827, %v1826
      %v1971 = vpack.c.b16 %v1829, %v1828
      %v1972 = vpack.c.b16 %v1831, %v1830
      %v1973 = vpack.c.b16 %v1833, %v1832
      %v1974 = vpack.c.b16 %v1835, %v1834
      %v1975 = vpack.c.b16 %v1837, %v1836
      %v1976 = vpack.c.b16 %v1839, %v1838
      %v1977 = vpack.c.b16 %v1841, %v1840
      %v1978 = vpack.c.b16 %v1843, %v1842
      %v1979 = vpack.c.b16 %v1845, %v1844
      %v1980 = vpack.c.b16 %v1847, %v1846
      %v1981 = vpack.c.b16 %v1849, %v1848
      %v1982 = vpack.c.b16 %v1851, %v1850
      %v1983 = vpack.c.b16 %v1853, %v1852
      %v1984 = vpack.c.b16 %v1855, %v1854
      %v1985 = vpack.c.b16 %v1857, %v1856
      %v1986 = vpack.c.b16 %v1859, %v1858
      %v1987 = vpack.c.b16 %v1861, %v1860
      %v1988 = vpack.c.b16 %v1863, %v1862
      %v1989 = vpack.c.b16 %v1865, %v1864
      %v1990 = vpack.c.b16 %v1867, %v1866
      %v1991 = vpack.c.b16 %v1869, %v1868
      %v1992 = vpack.c.b16 %v1871, %v1870
      %v1993 = vpack.c.b16 %v1873, %v1872
      %v1994 = vpack.c.b16 %v1875, %v1874
      %v1995 = vpack.c.b16 %v1877, %v1876
      %v1996 = vpack.c.b16 %v1879, %v1878
      %v1997 = vpack.c.b16 %v1881, %v1880
      %v1998 = vpack.c.b16 %v1883, %v1882
      %v1999 = vpack.c.b16 %v1885, %v1884
      %v2000 = vpack.c.b16 %v1887, %v1886
      %v2001 = vpack.c.b16 %v1889, %v1888
      %v2002 = vpack.c.b16 %v1891, %v1890
      %v2003 = vpack.c.b16 %v1893, %v1892
      %v2004 = vpack.c.b16 %v1895, %v1894
      %v2005 = vpack.c.b16 %v1897, %v1896
      %v2006 = vpack.c.b16 %v1899, %v1898
      %v2007 = vpack.c.b16 %v1901, %v1900
      %v2008 = vpack.c.b16 %v1903, %v1902
      %v2009 = vpack.c.b16 %v1905, %v1904
      %v2010 = vpack.c.b16 %v1907, %v1906
      %v2011 = vpack.c.b16 %v1909, %v1908
      %v2012 = vpack.c.b16 %v1911, %v1910
      %v2013 = vpack.c.b16 %v1913, %v1912
      %v2014 = vpack.c.b16 %v1915, %v1914
      %v2015 = vpack.c.b16 %v1917, %v1916
      %v2016 = vpack.c.b16 %v1919, %v1918
      %v2017 = vpack.c.b16 %v1921, %v1920
      %v2018 = vpack.c.b16 %v1923, %v1922
      %v2019 = vpack.c.b16 %v1925, %v1924
      %v2020 = vpack.c.b16 %v1927, %v1926
      %v2021 = vpack.c.b16 %v1929, %v1928
      %v2022 = vpack.c.b16 %v1931, %v1930
      %v2023 = vpack.c.b16 %v1933, %v1932
      %v2024 = vpack.c.b16 %v1935, %v1934
      %v2025 = vpack.c.b16 %v1937, %v1936
      %v2026 = vpack.c.b16 %v1939, %v1938
      %v2027 = vpack.c.b16 %v1941, %v1940
      %v2028 = vpack.c.b16 %v1943, %v1942
      %v2029 = vpack.c.b16 %v1945, %v1944
      %v2030 = vpack.c.b16 %v1947, %v1946
      %v2031 = vpack.c.b16 %v1949, %v1948
      %v2032 = vpack.c.b16 %v1951, %v1950
      %v2033 = vpack.c.b16 %v1953, %v1952
      %v2034 = vpack.c.b16 %v1955, %v1954
      %v2035 = vpack.c.b16 %v1957, %v1956
      %v2036 = vpack.c.b16 %v1959, %v1958
      %v2037 = vpack.c.b16 %v1961, %v1960
      %v2038 = vpack.c.b16 %v1963, %v1962
      %v2039 = vpack.c.b16 %v1965, %v1964
      %v2040 = vpack.c.b16 %v1967, %v1966
      %v2041 = vpack.c.b16 %v1969, %v1968
      %2114 = vmatprep.subr.bf16.mxu0 0
      %2115 = vmatpush1.bf16.msra.mxu0 %v1970
      %2116 = vmatprep.subr.bf16.mxu0 0
      %2117 = vmatpush1.bf16.msra.mxu0 %v1971
      %2118 = vmatprep.subr.bf16.mxu0 0
      %2119 = vmatpush1.bf16.msra.mxu0 %v1972
      %2120 = vmatprep.subr.bf16.mxu0 0
      %2121 = vmatpush1.bf16.msra.mxu0 %v1973
      %2122 = vmatprep.subr.bf16.mxu0 0
      %2123 = vmatpush1.bf16.msra.mxu0 %v1974
      %2124 = vmatprep.subr.bf16.mxu0 0
      %2125 = vmatpush1.bf16.msra.mxu0 %v1975
      %2126 = vmatprep.subr.bf16.mxu0 0
      %2127 = vmatpush1.bf16.msra.mxu0 %v1976
      %2128 = vmatprep.subr.bf16.mxu0 0
      %2129 = vmatpush1.bf16.msra.mxu0 %v1977
      %2130 = vmatprep.subr.bf16.mxu0 0
      %2131 = vmatpush1.bf16.msra.mxu0 %v1978
      %2132 = vmatprep.subr.bf16.mxu0 0
      %2133 = vmatpush1.bf16.msra.mxu0 %v1979
      %2134 = vmatprep.subr.bf16.mxu0 0
      %2135 = vmatpush1.bf16.msra.mxu0 %v1980
      %2136 = vmatprep.subr.bf16.mxu0 0
      %2137 = vmatpush1.bf16.msra.mxu0 %v1981
      %2138 = vmatprep.subr.bf16.mxu0 0
      %2139 = vmatpush1.bf16.msra.mxu0 %v1982
      %2140 = vmatprep.subr.bf16.mxu0 0
      %2141 = vmatpush1.bf16.msra.mxu0 %v1983
      %2142 = vmatprep.subr.bf16.mxu0 0
      %2143 = vmatpush1.bf16.msra.mxu0 %v1984
      %2144 = vmatprep.subr.bf16.mxu0 0
      %2145 = vmatpush1.bf16.msra.mxu0 %v1985
      %2146 = vmatprep.mubr.bf16.mxu0 %v1450
      %2147 = vmatmul.mubr.bf16.gmra.mrb[0].mxu0 %v1438
      %v2148 = vpop.f32.mrb[0].mxu0
      %v2149 = vadd.f32 0.0, %v2148
      %v2150 = vpop.f32.mrb[0].mxu0
      %v2151 = vpop.f32.mrb[0].mxu0
      %v2152 = vadd.f32 0.0, %v2151
      %v2153 = vpop.f32.mrb[0].mxu0
      %2154 = vmatprep.mubr.bf16.mxu0 %v1451
      %2155 = vmatmul.mubr.bf16.gmra.mrb[0].mxu0 %v1439
      %v2156 = vpop.f32.mrb[0].mxu0
      %v2157 = vadd.f32 0.0, %v2156
      %v2158 = vpop.f32.mrb[0].mxu0
      %v2159 = vpop.f32.mrb[0].mxu0
      %v2160 = vadd.f32 0.0, %v2159
      %v2161 = vpop.f32.mrb[0].mxu0
      %2162 = vmatprep.mubr.bf16.mxu0 %v1452
      %2163 = vmatmul.mubr.bf16.gmra.mrb[0].mxu0 %v1440
      %v2164 = vpop.f32.mrb[0].mxu0
      %v2165 = vadd.f32 0.0, %v2164
      %v2166 = vpop.f32.mrb[0].mxu0
      %v2167 = vpop.f32.mrb[0].mxu0
      %v2168 = vadd.f32 0.0, %v2167
      %v2169 = vpop.f32.mrb[0].mxu0
      %2170 = vmatprep.mubr.bf16.mxu0 %v1453
      %2171 = vmatmul.mubr.bf16.gmra.mrb[0].mxu0 %v1441
      %v2172 = vpop.f32.mrb[0].mxu0
      %v2173 = vadd.f32 0.0, %v2172
      %v2174 = vpop.f32.mrb[0].mxu0
      %v2175 = vpop.f32.mrb[0].mxu0
      %v2176 = vadd.f32 0.0, %v2175
      %v2177 = vpop.f32.mrb[0].mxu0
      %2178 = vdwg.mxu0
      %2179 = vmatprep.subr.bf16.mxu0 0
      %2180 = vmatpush1.bf16.msra.mxu0 %v1986
      %2181 = vmatprep.subr.bf16.mxu0 0
      %2182 = vmatpush1.bf16.msra.mxu0 %v1987
      %2183 = vmatprep.subr.bf16.mxu0 0
      %2184 = vmatpush1.bf16.msra.mxu0 %v1988
      %2185 = vmatprep.subr.bf16.mxu0 0
      %2186 = vmatpush1.bf16.msra.mxu0 %v1989
      %2187 = vmatprep.subr.bf16.mxu0 0
      %2188 = vmatpush1.bf16.msra.mxu0 %v1990
      %2189 = vmatprep.subr.bf16.mxu0 0
      %2190 = vmatpush1.bf16.msra.mxu0 %v1991
      %2191 = vmatprep.subr.bf16.mxu0 0
      %2192 = vmatpush1.bf16.msra.mxu0 %v1992
      %2193 = vmatprep.subr.bf16.mxu0 0
      %2194 = vmatpush1.bf16.msra.mxu0 %v1993
      %2195 = vmatprep.subr.bf16.mxu0 0
      %2196 = vmatpush1.bf16.msra.mxu0 %v1994
      %2197 = vmatprep.subr.bf16.mxu0 0
      %2198 = vmatpush1.bf16.msra.mxu0 %v1995
      %2199 = vmatprep.subr.bf16.mxu0 0
      %2200 = vmatpush1.bf16.msra.mxu0 %v1996
      %2201 = vmatprep.subr.bf16.mxu0 0
      %2202 = vmatpush1.bf16.msra.mxu0 %v1997
      %2203 = vmatprep.subr.bf16.mxu0 0
      %2204 = vmatpush1.bf16.msra.mxu0 %v1998
      %2205 = vmatprep.subr.bf16.mxu0 0
      %2206 = vmatpush1.bf16.msra.mxu0 %v1999
      %2207 = vmatprep.subr.bf16.mxu0 0
      %2208 = vmatpush1.bf16.msra.mxu0 %v2000
      %2209 = vmatprep.subr.bf16.mxu0 0
      %2210 = vmatpush1.bf16.msra.mxu0 %v2001
      %2211 = vmatprep.mubr.bf16.mxu0 %v1474
      %2212 = vmatmul.mubr.bf16.gmra.mrb[0].mxu0 %v1462
      %v2213 = vpop.f32.mrb[0].mxu0
      %v2214 = vadd.f32 %v2149, %v2213
      %v2215 = vpop.f32.mrb[0].mxu0
      %v2216 = vpop.f32.mrb[0].mxu0
      %v2217 = vadd.f32 %v2152, %v2216
      %v2218 = vpop.f32.mrb[0].mxu0
      %2219 = vmatprep.mubr.bf16.mxu0 %v1475
      %2220 = vmatmul.mubr.bf16.gmra.mrb[0].mxu0 %v1463
      %v2221 = vpop.f32.mrb[0].mxu0
      %v2222 = vadd.f32 %v2157, %v2221
      %v2223 = vpop.f32.mrb[0].mxu0
      %v2224 = vpop.f32.mrb[0].mxu0
      %v2225 = vadd.f32 %v2160, %v2224
      %v2226 = vpop.f32.mrb[0].mxu0
      %2227 = vmatprep.mubr.bf16.mxu0 %v1476
      %2228 = vmatmul.mubr.bf16.gmra.mrb[0].mxu0 %v1464
      %v2229 = vpop.f32.mrb[0].mxu0
      %v2230 = vadd.f32 %v2165, %v2229
      %v2231 = vpop.f32.mrb[0].mxu0
      %v2232 = vpop.f32.mrb[0].mxu0
      %v2233 = vadd.f32 %v2168, %v2232
      %v2234 = vpop.f32.mrb[0].mxu0
      %2235 = vmatprep.mubr.bf16.mxu0 %v1477
      %2236 = vmatmul.mubr.bf16.gmra.mrb[0].mxu0 %v1465
      %v2237 = vpop.f32.mrb[0].mxu0
      %v2238 = vadd.f32 %v2173, %v2237
      %v2239 = vpop.f32.mrb[0].mxu0
      %v2240 = vpop.f32.mrb[0].mxu0
      %v2241 = vadd.f32 %v2176, %v2240
      %v2242 = vpop.f32.mrb[0].mxu0
      %2243 = vdwg.mxu0
      %2244 = vmatprep.subr.bf16.mxu0 0
      %2245 = vmatpush1.bf16.msra.mxu0 %v2002
      %2246 = vmatprep.subr.bf16.mxu0 0
      %2247 = vmatpush1.bf16.msra.mxu0 %v2003
      %2248 = vmatprep.subr.bf16.mxu0 0
      %2249 = vmatpush1.bf16.msra.mxu0 %v2004
      %2250 = vmatprep.subr.bf16.mxu0 0
      %2251 = vmatpush1.bf16.msra.mxu0 %v2005
      %2252 = vmatprep.subr.bf16.mxu0 0
      %2253 = vmatpush1.bf16.msra.mxu0 %v2006
      %2254 = vmatprep.subr.bf16.mxu0 0
      %2255 = vmatpush1.bf16.msra.mxu0 %v2007
      %2256 = vmatprep.subr.bf16.mxu0 0
      %2257 = vmatpush1.bf16.msra.mxu0 %v2008
      %2258 = vmatprep.subr.bf16.mxu0 0
      %2259 = vmatpush1.bf16.msra.mxu0 %v2009
      %2260 = vmatprep.subr.bf16.mxu0 0
      %2261 = vmatpush1.bf16.msra.mxu0 %v2010
      %2262 = vmatprep.subr.bf16.mxu0 0
      %2263 = vmatpush1.bf16.msra.mxu0 %v2011
      %2264 = vmatprep.subr.bf16.mxu0 0
      %2265 = vmatpush1.bf16.msra.mxu0 %v2012
      %2266 = vmatprep.subr.bf16.mxu0 0
      %2267 = vmatpush1.bf16.msra.mxu0 %v2013
      %2268 = vmatprep.subr.bf16.mxu0 0
      %2269 = vmatpush1.bf16.msra.mxu0 %v2014
      %2270 = vmatprep.subr.bf16.mxu0 0
      %2271 = vmatpush1.bf16.msra.mxu0 %v2015
      %2272 = vmatprep.subr.bf16.mxu0 0
      %2273 = vmatpush1.bf16.msra.mxu0 %v2016
      %2274 = vmatprep.subr.bf16.mxu0 0
      %2275 = vmatpush1.bf16.msra.mxu0 %v2017
      %2276 = vmatprep.mubr.bf16.mxu0 %v1498
      %2277 = vmatmul.mubr.bf16.gmra.mrb[0].mxu0 %v1486
      %v2278 = vpop.f32.mrb[0].mxu0
      %v2279 = vadd.f32 %v2214, %v2278
      %v2280 = vpop.f32.mrb[0].mxu0
      %v2281 = vpop.f32.mrb[0].mxu0
      %v2282 = vadd.f32 %v2217, %v2281
      %v2283 = vpop.f32.mrb[0].mxu0
      %2284 = vmatprep.mubr.bf16.mxu0 %v1499
      %2285 = vmatmul.mubr.bf16.gmra.mrb[0].mxu0 %v1487
      %v2286 = vpop.f32.mrb[0].mxu0
      %v2287 = vadd.f32 %v2222, %v2286
      %v2288 = vpop.f32.mrb[0].mxu0
      %v2289 = vpop.f32.mrb[0].mxu0
      %v2290 = vadd.f32 %v2225, %v2289
      %v2291 = vpop.f32.mrb[0].mxu0
      %2292 = vmatprep.mubr.bf16.mxu0 %v1500
      %2293 = vmatmul.mubr.bf16.gmra.mrb[0].mxu0 %v1488
      %v2294 = vpop.f32.mrb[0].mxu0
      %v2295 = vadd.f32 %v2230, %v2294
      %v2296 = vpop.f32.mrb[0].mxu0
      %v2297 = vpop.f32.mrb[0].mxu0
      %v2298 = vadd.f32 %v2233, %v2297
      %v2299 = vpop.f32.mrb[0].mxu0
      %2300 = vmatprep.mubr.bf16.mxu0 %v1501
      %2301 = vmatmul.mubr.bf16.gmra.mrb[0].mxu0 %v1489
      %v2302 = vpop.f32.mrb[0].mxu0
      %v2303 = vadd.f32 %v2238, %v2302
      %v2304 = vpop.f32.mrb[0].mxu0
      %v2305 = vpop.f32.mrb[0].mxu0
      %v2306 = vadd.f32 %v2241, %v2305
      %v2307 = vpop.f32.mrb[0].mxu0
      %2308 = vdwg.mxu0
      %2309 = vmatprep.subr.bf16.mxu0 0
      %2310 = vmatpush1.bf16.msra.mxu0 %v2018
      %2311 = vmatprep.subr.bf16.mxu0 0
      %2312 = vmatpush1.bf16.msra.mxu0 %v2019
      %2313 = vmatprep.subr.bf16.mxu0 0
      %2314 = vmatpush1.bf16.msra.mxu0 %v2020
      %2315 = vmatprep.subr.bf16.mxu0 0
      %2316 = vmatpush1.bf16.msra.mxu0 %v2021
      %2317 = vmatprep.subr.bf16.mxu0 0
      %2318 = vmatpush1.bf16.msra.mxu0 %v2022
      %2319 = vmatprep.subr.bf16.mxu0 0
      %2320 = vmatpush1.bf16.msra.mxu0 %v2023
      %2321 = vmatprep.subr.bf16.mxu0 0
      %2322 = vmatpush1.bf16.msra.mxu0 %v2024
      %2323 = vmatprep.subr.bf16.mxu0 0
      %2324 = vmatpush1.bf16.msra.mxu0 %v2025
      %2325 = vmatprep.subr.bf16.mxu0 0
      %2326 = vmatpush1.bf16.msra.mxu0 %v2026
      %2327 = vmatprep.subr.bf16.mxu0 0
      %2328 = vmatpush1.bf16.msra.mxu0 %v2027
      %2329 = vmatprep.subr.bf16.mxu0 0
      %2330 = vmatpush1.bf16.msra.mxu0 %v2028
      %2331 = vmatprep.subr.bf16.mxu0 0
      %2332 = vmatpush1.bf16.msra.mxu0 %v2029
      %2333 = vmatprep.subr.bf16.mxu0 0
      %2334 = vmatpush1.bf16.msra.mxu0 %v2030
      %2335 = vmatprep.subr.bf16.mxu0 0
      %2336 = vmatpush1.bf16.msra.mxu0 %v2031
      %2337 = vmatprep.subr.bf16.mxu0 0
      %2338 = vmatpush1.bf16.msra.mxu0 %v2032
      %2339 = vmatprep.subr.bf16.mxu0 0
      %2340 = vmatpush1.bf16.msra.mxu0 %v2033
      %2341 = vmatprep.mubr.bf16.mxu0 %v1522
      %2342 = vmatmul.mubr.bf16.gmra.mrb[0].mxu0 %v1510
      %v2343 = vpop.f32.mrb[0].mxu0
      %v2344 = vadd.f32 %v2279, %v2343
      %v2345 = vpop.f32.mrb[0].mxu0
      %v2346 = vpop.f32.mrb[0].mxu0
      %v2347 = vadd.f32 %v2282, %v2346
      %v2348 = vpop.f32.mrb[0].mxu0
      %2349 = vmatprep.mubr.bf16.mxu0 %v1523
      %2350 = vmatmul.mubr.bf16.gmra.mrb[0].mxu0 %v1511
      %v2351 = vpop.f32.mrb[0].mxu0
      %v2352 = vadd.f32 %v2287, %v2351
      %v2353 = vpop.f32.mrb[0].mxu0
      %v2354 = vpop.f32.mrb[0].mxu0
      %v2355 = vadd.f32 %v2290, %v2354
      %v2356 = vpop.f32.mrb[0].mxu0
      %2357 = vmatprep.mubr.bf16.mxu0 %v1524
      %2358 = vmatmul.mubr.bf16.gmra.mrb[0].mxu0 %v1512
      %v2359 = vpop.f32.mrb[0].mxu0
      %v2360 = vadd.f32 %v2295, %v2359
      %v2361 = vpop.f32.mrb[0].mxu0
      %v2362 = vpop.f32.mrb[0].mxu0
      %v2363 = vadd.f32 %v2298, %v2362
      %v2364 = vpop.f32.mrb[0].mxu0
      %2365 = vmatprep.mubr.bf16.mxu0 %v1525
      %2366 = vmatmul.mubr.bf16.gmra.mrb[0].mxu0 %v1513
      %v2367 = vpop.f32.mrb[0].mxu0
      %v2368 = vadd.f32 %v2303, %v2367
      %v2369 = vpop.f32.mrb[0].mxu0
      %v2370 = vpop.f32.mrb[0].mxu0
      %v2371 = vadd.f32 %v2306, %v2370
      %v2372 = vpop.f32.mrb[0].mxu0
      %2373 = vdwg.mxu0
      %2374 = vmatprep.subr.bf16.mxu0 0
      %2375 = vmatpush1.bf16.msra.mxu0 %v2034
      %2376 = vmatprep.subr.bf16.mxu0 0
      %2377 = vmatpush1.bf16.msra.mxu0 %v2035
      %2378 = vmatprep.subr.bf16.mxu0 0
      %2379 = vmatpush1.bf16.msra.mxu0 %v2036
      %2380 = vmatprep.subr.bf16.mxu0 0
      %2381 = vmatpush1.bf16.msra.mxu0 %v2037
      %2382 = vmatprep.subr.bf16.mxu0 0
      %2383 = vmatpush1.bf16.msra.mxu0 %v2038
      %2384 = vmatprep.subr.bf16.mxu0 0
      %2385 = vmatpush1.bf16.msra.mxu0 %v2039
      %2386 = vmatprep.subr.bf16.mxu0 0
      %2387 = vmatpush1.bf16.msra.mxu0 %v2040
      %2388 = vmatprep.subr.bf16.mxu0 0
      %2389 = vmatpush1.bf16.msra.mxu0 %v2041
      %2390 = vmatprep.subr.bf16.mxu0 0
      %2391 = vmatpush1.bf16.msra.mxu0 0
      %2392 = vmatprep.subr.bf16.mxu0 0
      %2393 = vmatpush1.bf16.msra.mxu0 0
      %2394 = vmatprep.subr.bf16.mxu0 0
      %2395 = vmatpush1.bf16.msra.mxu0 0
      %2396 = vmatprep.subr.bf16.mxu0 0
      %2397 = vmatpush1.bf16.msra.mxu0 0
      %2398 = vmatprep.subr.bf16.mxu0 0
      %2399 = vmatpush1.bf16.msra.mxu0 0
      %2400 = vmatprep.subr.bf16.mxu0 0
      %2401 = vmatpush1.bf16.msra.mxu0 0
      %2402 = vmatprep.subr.bf16.mxu0 0
      %2403 = vmatpush1.bf16.msra.mxu0 0
      %2404 = vmatprep.subr.bf16.mxu0 0
      %2405 = vmatpush1.bf16.msra.mxu0 0
      %2406 = vmatprep.mubr.bf16.mxu0 0
      %2407 = vmatmul.mubr.bf16.gmra.mrb[0].mxu0 %v1534
      %v2408 = vpop.f32.mrb[0].mxu0
      %v2409 = vadd.f32 %v2344, %v2408
      %v2410 = vpop.f32.mrb[0].mxu0
      %v2411 = vpop.f32.mrb[0].mxu0
      %v2412 = vadd.f32 %v2347, %v2411
      %v2413 = vpop.f32.mrb[0].mxu0
      %2414 = vmatprep.mubr.bf16.mxu0 0
      %2415 = vmatmul.mubr.bf16.gmra.mrb[0].mxu0 %v1535
      %v2416 = vpop.f32.mrb[0].mxu0
      %v2417 = vadd.f32 %v2352, %v2416
      %v2418 = vpop.f32.mrb[0].mxu0
      %v2419 = vpop.f32.mrb[0].mxu0
      %v2420 = vadd.f32 %v2355, %v2419
      %v2421 = vpop.f32.mrb[0].mxu0
      %2422 = vmatprep.mubr.bf16.mxu0 0
      %2423 = vmatmul.mubr.bf16.gmra.mrb[0].mxu0 %v1536
      %v2424 = vpop.f32.mrb[0].mxu0
      %v2425 = vadd.f32 %v2360, %v2424
      %v2426 = vpop.f32.mrb[0].mxu0
      %v2427 = vpop.f32.mrb[0].mxu0
      %v2428 = vadd.f32 %v2363, %v2427
      %v2429 = vpop.f32.mrb[0].mxu0
      %2430 = vmatprep.mubr.bf16.mxu0 0
      %2431 = vmatmul.mubr.bf16.gmra.mrb[0].mxu0 %v1537
      %v2432 = vpop.f32.mrb[0].mxu0
      %v2433 = vadd.f32 %v2368, %v2432
      %v2434 = vpop.f32.mrb[0].mxu0
      %v2435 = vpop.f32.mrb[0].mxu0
      %v2436 = vadd.f32 %v2371, %v2435
      %v2437 = vpop.f32.mrb[0].mxu0
      %2438 = vdwg.mxu0
      %v2439 = vld [vmem:[%s5] sm:$0x1]
      %v2441 = vlaneseq
      %v2442 = vshrl.u32 %v2441, 7
      %v2443 = vsub.s32 0, %v2442
      %v2444 = vrot.slane %v2439, %v2443
      %v2446 = vmul.f32 %v2409, %v2444
      %v2447 = vmul.f32 %v2412, %v2444
      %v2448 = vmul.f32 %v2417, %v2444
      %v2449 = vmul.f32 %v2420, %v2444
      %v2450 = vmul.f32 %v2425, %v2444
      %v2451 = vmul.f32 %v2428, %v2444
      %v2452 = vmul.f32 %v2433, %v2444
      %v2453 = vmul.f32 %v2436, %v2444
      %v2454 = vld [vmem:[%s6] sm:$0x1]
      %v2456 = vlaneseq
      %v2457 = vshrl.u32 %v2456, 7
      %v2458 = vsub.s32 0, %v2457
      %v2459 = vrot.slane %v2454, %v2458
      %v2461 = vadd.f32 %v2446, %v2459
      %v2462 = vadd.f32 %v2447, %v2459
      %v2463 = vadd.f32 %v2448, %v2459
      %v2464 = vadd.f32 %v2449, %v2459
      %v2465 = vadd.f32 %v2450, %v2459
      %v2466 = vadd.f32 %v2451, %v2459
      %v2467 = vadd.f32 %v2452, %v2459
      %v2468 = vadd.f32 %v2453, %v2459
      %v2469 = vmax.f32 %v2461, 0.0
      %v2470 = vmax.f32 %v2462, 0.0
      %v2471 = vmax.f32 %v2463, 0.0
      %v2472 = vmax.f32 %v2464, 0.0
      %v2473 = vmax.f32 %v2465, 0.0
      %v2474 = vmax.f32 %v2466, 0.0
      %v2475 = vmax.f32 %v2467, 0.0
      %v2476 = vmax.f32 %v2468, 0.0
      %2477 = vst [vmem:[%s278] sm:$0xff] %v2469
      %2478 = vst [vmem:[%s278 + $0x8] sm:$0xff] %v2470
      %2479 = vst [vmem:[%s278 + $0x10] sm:$0xff] %v2471
      %2480 = vst [vmem:[%s278 + $0x18] sm:$0xff] %v2472
      %2481 = vst [vmem:[%s278 + $0x20] sm:$0xff] %v2473
      %2482 = vst [vmem:[%s278 + $0x28] sm:$0xff] %v2474
      %2483 = vst [vmem:[%s278 + $0x30] sm:$0xff] %v2475
      %2484 = vst [vmem:[%s278 + $0x38] sm:$0xff] %v2476
      %p2485 = scmp.lt.s32.totalorder %s18, 1
      %s2486 = scalar_select %p2485, %s18, 1
      %s2487 = smul.addr %s2486, 8
      %s2488 = smul.addr %s2487, 8
      %s2489 = scalar_lea.vmem %s7, %s2488
      // Predicated region
      $region49: #{down_forward.1} parent=47 // pred_check
        %p2490 = pneg %p188
      $region50: #{down_forward.1} parent=47 // pred_check_branch
        %2492 = sbr.rel (%p2490) target = $region52
      $region51: #{down_forward.1} parent=47 // pred_region
        _
      $region52: #{down_forward.1} parent=47 // pred_fallthru
        _
    $region48: #{down_forward.1} parent=5 // pred_fallthru
      _
    %p2493 = scmp.le.s32.totalorder 2, %s13
    // Predicated region
    $region53: #{down_forward.1} parent=5 // pred_check
      %p2494 = pneg %p2493
    $region54: #{down_forward.1} parent=5 // pred_check_branch
      %2496 = sbr.rel (%p2494) target = $region56
    $region55: #{down_forward.1} parent=5 // pred_region
      %s2497 = ssub.s32 %s13, 2
      // Predicated region
      $region57: #{down_forward.1} parent=55 // pred_check
        %p2498 = pneg %p194
      $region58: #{down_forward.1} parent=55 // pred_check_branch
        %2500 = sbr.rel (%p2498) target = $region60
      $region59: #{down_forward.1} parent=55 // pred_region
        %p2501 = scmp.lt.s32.totalorder %s19, 1
        %s2502 = scalar_select %p2501, %s19, 1
        %s2503 = smul.addr %s2502, 8
        %s2504 = smul.addr %s2503, 8
        %s2505 = scalar_lea.vmem %s7, %s2504
      $region60: #{down_forward.1} parent=55 // pred_fallthru
        _
    $region56: #{down_forward.1} parent=5 // pred_fallthru
      _
  $region6: #{down_forward.1} parent=0 // loop_footer
    %s17 = sadd.s32 1, %s13
  $region7: #{down_forward.1} parent=0 // loop_footer_branch
    %12 = sbr.rel target = $region3
  $region8: #{down_forward.1} parent=0 // loop_exit
    _

</llo_original>
